<compile_context>
chip_gen: v7x
topology: tpu7x:2x2x1
jax: 0.10.0
libtpu: 0.0.40
codegen_flags: <defaults>
</compile_context>

<pallas_src>
import functools
import math

import jax
import jax.numpy as jnp
from jax import lax
from jax.experimental import pallas as pl
from jax.experimental.pallas import tpu as pltpu

D_MODEL = 32
N_HEAD = 4
D_K = D_MODEL // N_HEAD
LN_EPS = 1e-5


def _attention_kernel(x_ref, wqkv_ref, bqkv_ref, wo_ref, bo_ref,
                      gamma_ref, beta_ref, out_ref,
                      *, n_head, d_k, d_model, seq, bpb):
    """One grid step handles `bpb` batch elements (= bpb*seq packed rows)."""
    rows = bpb * seq
    x = x_ref[...]                                     # (rows, 3*d_model) = [q | k | v] per row

    # Fused QKV projection: a single MXU matmul against the block-diagonal weight.
    qkv = jnp.dot(x, wqkv_ref[...], preferred_element_type=jnp.float32) + bqkv_ref[...]

    def split_heads(block):
        # (rows, d_model) -> (bpb*n_head, seq, d_k): one relayout per operand so the
        # head axis becomes a dot_general batch dim (replaces 24 tiny lane slices).
        return (block.reshape(bpb, seq, n_head, d_k)
                     .transpose(0, 2, 1, 3)
                     .reshape(bpb * n_head, seq, d_k))

    q = split_heads(qkv[:, :d_model])
    k = split_heads(qkv[:, d_model:2 * d_model])
    v = split_heads(qkv[:, 2 * d_model:])

    # Batched scores over all (batch, head) pairs; contract d_k directly (no K^T).
    s = jnp.einsum('bqd,bkd->bqk', q, k,
                   preferred_element_type=jnp.float32) * (1.0 / math.sqrt(d_k))
    s = s - jnp.max(s, axis=-1, keepdims=True)
    p = jnp.exp(s)
    attn = p / jnp.sum(p, axis=-1, keepdims=True)      # exact reciprocal (not EUP-bound)

    ctx = jnp.einsum('bqk,bkd->bqd', attn, v, preferred_element_type=jnp.float32)

    # Fold heads back to (rows, d_model) and do ONE output-projection matmul.
    ctx = (ctx.reshape(bpb, n_head, seq, d_k)
              .transpose(0, 2, 1, 3)
              .reshape(rows, d_model))
    mha = jnp.dot(ctx, wo_ref[...], preferred_element_type=jnp.float32) + bo_ref[...]

    # Residual (raw query lives in the first d_model lanes of the packed input) + LayerNorm.
    x_res = mha + x[:, :d_model]
    mean = jnp.mean(x_res, axis=-1, keepdims=True)
    cent = x_res - mean
    var = jnp.mean(cent * cent, axis=-1, keepdims=True)
    y = cent * lax.rsqrt(var + LN_EPS)
    out_ref[...] = (y * gamma_ref[...] + beta_ref[...]).astype(out_ref.dtype)


def _num_row_tiles(batch, seq):
    """Row-tile count for the pallas grid.

    Split into 2 "parallel" tiles only when (a) the chip actually has a second
    TensorCore to shard onto (v7x) and (b) each tile has enough rows (>=256) to
    amortize per-step overhead / fill the MXU row dimension.  On v5e/v6e the
    grid is a sequential loop on one TC, so the extra step would be pure
    overhead plus a duplicate weight-window prefetch.
    """
    rows = batch * seq
    if batch % 2 != 0 or (rows // 2) % 8 != 0 or (rows // 2) < 256:
        return 1
    try:
        kind = jax.devices()[0].device_kind.lower()
    except Exception:
        return 1
    return 2 if "v7" in kind else 1


def pack_params(params):
    """Build the fused QKV weight/bias ONCE (hoisted out of the forward path)."""
    d = params["wq"].shape[0]
    z = jnp.zeros((d, d), params["wq"].dtype)
    w_qkv = jnp.concatenate([
        jnp.concatenate([params["wq"], z, z], axis=1),
        jnp.concatenate([z, params["wk"], z], axis=1),
        jnp.concatenate([z, z, params["wv"]], axis=1),
    ], axis=0)                                                    # (3D, 3D) block-diagonal
    b_qkv = jnp.concatenate([params["bq"], params["bk"], params["bv"]], axis=1)  # (1, 3D)
    return {"w_qkv": w_qkv, "b_qkv": b_qkv, "wo": params["wo"], "bo": params["bo"],
            "gamma": params["gamma"], "beta": params["beta"]}


@jax.jit
def attention_forward(query, key, value, packed):
    """query/key/value: (B, N, d_model) float32 (batch-first, like the PyTorch module)."""
    B, n_q, D = query.shape
    _, n_k, _ = key.shape
    # The fused row-packed QKV path requires matching sequence lengths (true here).
    # TODO(synk): add an unfused projection path for cross-attention with n_q != n_k.
    assert n_q == n_k and key.shape == value.shape
    N = n_q

    # Pack [q | k | v] per (batch, position) row: (B*N, 3D).
    x_cat = jnp.concatenate([query, key, value], axis=-1).reshape(B * N, 3 * D)

    num_tiles = _num_row_tiles(B, N)
    bpb = B // num_tiles
    rows = bpb * N

    kernel = functools.partial(_attention_kernel, n_head=N_HEAD, d_k=D_K,
                               d_model=D, seq=N, bpb=bpb)

    out_flat = pl.pallas_call(
        kernel,
        out_shape=jax.ShapeDtypeStruct((B * N, D), query.dtype),
        grid_spec=pltpu.PrefetchScalarGridSpec(
            num_scalar_prefetch=0,
            grid=(num_tiles,),
            in_specs=[
                pl.BlockSpec((rows, 3 * D), lambda i: (i, 0)),    # packed [q|k|v] rows
                pl.BlockSpec((3 * D, 3 * D), lambda i: (0, 0)),   # fused W_qkv (VMEM-resident)
                pl.BlockSpec((1, 3 * D), lambda i: (0, 0)),       # fused QKV bias
                pl.BlockSpec((D, D), lambda i: (0, 0)),           # W_o
                pl.BlockSpec((1, D), lambda i: (0, 0)),           # b_o
                pl.BlockSpec((1, D), lambda i: (0, 0)),           # gamma
                pl.BlockSpec((1, D), lambda i: (0, 0)),           # beta
            ],
            out_specs=pl.BlockSpec((rows, D), lambda i: (i, 0)),
        ),
        compiler_params=pltpu.CompilerParams(
            dimension_semantics=("parallel",)),
    )(x_cat, packed["w_qkv"], packed["b_qkv"], packed["wo"],
      packed["bo"], packed["gamma"], packed["beta"])

    return out_flat.reshape(B, N, D)


def _xavier_uniform(key, in_dim, out_dim):
    # Matches nn.init.xavier_uniform_ with gain=1 (w_init='linear').
    a = math.sqrt(6.0 / (in_dim + out_dim))
    # Stored as (in_dim, out_dim) so everything computes x @ W (== x @ W_pt.T).
    return jax.random.uniform(key, (in_dim, out_dim), jnp.float32, -a, a)


def init_params(key, d_model):
    keys = jax.random.split(key, 8)
    bound = 1.0 / math.sqrt(d_model)  # nn.Linear default bias init
    return {
        "wq": _xavier_uniform(keys[0], d_model, d_model),
        "wk": _xavier_uniform(keys[1], d_model, d_model),
        "wv": _xavier_uniform(keys[2], d_model, d_model),
        "wo": _xavier_uniform(keys[3], d_model, d_model),
        "bq": jax.random.uniform(keys[4], (1, d_model), jnp.float32, -bound, bound),
        "bk": jax.random.uniform(keys[5], (1, d_model), jnp.float32, -bound, bound),
        "bv": jax.random.uniform(keys[6], (1, d_model), jnp.float32, -bound, bound),
        "bo": jax.random.uniform(keys[7], (1, d_model), jnp.float32, -bound, bound),
        "gamma": jnp.ones((1, d_model), jnp.float32),
        "beta": jnp.zeros((1, d_model), jnp.float32),
    }


def attention_reference(query, key, value, params):
    """Pure-JAX reference of the PyTorch module (dropout=0 / eval)."""
    B, Nq, D = query.shape

    # Highest matmul precision so the f32 reference matches the kernel's f32 MXU
    # accumulation when compiled on hardware (no-op on exact-f32 backends).
    with jax.default_matmul_precision("highest"):
        def proj(x, w, b):
            y = x @ w + b                              # (B, N, D)
            y = y.reshape(B, -1, N_HEAD, D_K)
            return y.transpose(0, 2, 1, 3)             # (B, H, N, d_k)

        Q = proj(query, params["wq"], params["bq"])
        K = proj(key, params["wk"], params["bk"])
        V = proj(value, params["wv"], params["bv"])
        scores = jnp.einsum("bhqd,bhkd->bhqk", Q, K) * (D_K ** -0.5)
        attn = jax.nn.softmax(scores, axis=-1)
        out = jnp.einsum("bhqk,bhkd->bhqd", attn, V)
        out = out.transpose(0, 2, 1, 3).reshape(B, Nq, D)
        out = out @ params["wo"] + params["bo"]
    x = out + query
    mean = jnp.mean(x, axis=-1, keepdims=True)
    var = jnp.mean((x - mean) ** 2, axis=-1, keepdims=True)
    return (x - mean) / jnp.sqrt(var + LN_EPS) * params["gamma"] + params["beta"]


if __name__ == "__main__":
    B, N_Q, N_K = 2, 8, 8
    root = jax.random.PRNGKey(0)
    k_q, k_k, k_v, k_p = jax.random.split(root, 4)

    query = jax.random.normal(k_q, (B, N_Q, D_MODEL), jnp.float32)
    key = jax.random.normal(k_k, (B, N_K, D_MODEL), jnp.float32)
    value = jax.random.normal(k_v, (B, N_K, D_MODEL), jnp.float32)
    params = init_params(k_p, D_MODEL)
    packed = pack_params(params)        # fused weights built once, outside the jitted forward

    out = attention_forward(query, key, value, packed)
    jax.block_until_ready(out)

    ref = attention_reference(query, key, value, params)
    assert out.shape == (B, N_Q, D_MODEL)
    # Tolerance back to 1e-4: the approximate EUP reciprocal (the reason it had been
    # loosened to 2e-3) is gone; everything is exact f32 arithmetic now.
    assert jnp.allclose(out, ref, atol=1e-4, rtol=1e-4), "mismatch vs reference"

    print("KERNEL_OK")
</pallas_src>

<mosaic_0001>
module attributes {stable_mosaic.version = 11 : i64} {
  func.func @_attention_kernel(%arg0: i32, %arg1: memref<16x96xf32, #tpu.memory_space<vmem>>, %arg2: memref<96x96xf32, #tpu.memory_space<vmem>>, %arg3: memref<1x96xf32, #tpu.memory_space<vmem>>, %arg4: memref<32x32xf32, #tpu.memory_space<vmem>>, %arg5: memref<1x32xf32, #tpu.memory_space<vmem>>, %arg6: memref<1x32xf32, #tpu.memory_space<vmem>>, %arg7: memref<1x32xf32, #tpu.memory_space<vmem>>, %arg8: memref<16x32xf32, #tpu.memory_space<vmem>>) attributes {dimension_semantics = [#tpu.dimension_semantics<parallel>], iteration_bounds = array<i64: 1>, scalar_prefetch = 0 : i64, scratch_operands = 0 : i64, tpu.core_type = #tpu.core_type<tc>, window_params = [{transform_indices = @transform_0, window_bounds = array<i64: 16, 96>}, {pipeline_mode = #tpu.pipeline_mode<synchronous>, transform_indices = @transform_1, window_bounds = array<i64: 96, 96>}, {pipeline_mode = #tpu.pipeline_mode<synchronous>, transform_indices = @transform_2, window_bounds = array<i64: 1, 96>}, {pipeline_mode = #tpu.pipeline_mode<synchronous>, transform_indices = @transform_3, window_bounds = array<i64: 32, 32>}, {pipeline_mode = #tpu.pipeline_mode<synchronous>, transform_indices = @transform_4, window_bounds = array<i64: 1, 32>}, {pipeline_mode = #tpu.pipeline_mode<synchronous>, transform_indices = @transform_5, window_bounds = array<i64: 1, 32>}, {pipeline_mode = #tpu.pipeline_mode<synchronous>, transform_indices = @transform_6, window_bounds = array<i64: 1, 32>}, {transform_indices = @transform_7, window_bounds = array<i64: 16, 32>}]} {
    %c0 = arith.constant 0 : index
    %c0_0 = arith.constant 0 : index
    %0 = vector.load %arg1[%c0, %c0_0] : memref<16x96xf32, #tpu.memory_space<vmem>>, vector<16x96xf32>
    %c0_1 = arith.constant 0 : index
    %c0_2 = arith.constant 0 : index
    %1 = vector.load %arg2[%c0_1, %c0_2] : memref<96x96xf32, #tpu.memory_space<vmem>>, vector<96x96xf32>
    %cst = arith.constant dense<0.000000e+00> : vector<16x96xf32>
    %2 = tpu.matmul %0, %1, %cst {dimension_numbers = #tpu.dot_dimension_numbers<[1], [0], [0], [1], [0, 0, 1, 1], [], []>} : vector<16x96xf32>, vector<96x96xf32>, vector<16x96xf32> -> vector<16x96xf32>
    %c0_3 = arith.constant 0 : index
    %c0_4 = arith.constant 0 : index
    %3 = vector.load %arg3[%c0_3, %c0_4] : memref<1x96xf32, #tpu.memory_space<vmem>>, vector<1x96xf32>
    %4 = vector.broadcast %3 : vector<1x96xf32> to vector<16x96xf32>
    %5 = arith.addf %2, %4 : vector<16x96xf32>
    %6 = vector.extract_strided_slice %5 {offsets = [0, 0], sizes = [16, 32], strides = [1, 1]} : vector<16x96xf32> to vector<16x32xf32>
    %7 = vector.shape_cast %6 : vector<16x32xf32> to vector<2x8x4x8xf32>
    %8 = tpu.transpose %7, [0, 2, 1, 3] : vector<2x8x4x8xf32> -> vector<2x4x8x8xf32>
    %9 = vector.shape_cast %8 : vector<2x4x8x8xf32> to vector<8x8x8xf32>
    %10 = vector.extract_strided_slice %5 {offsets = [0, 32], sizes = [16, 32], strides = [1, 1]} : vector<16x96xf32> to vector<16x32xf32>
    %11 = vector.shape_cast %10 : vector<16x32xf32> to vector<2x8x4x8xf32>
    %12 = tpu.transpose %11, [0, 2, 1, 3] : vector<2x8x4x8xf32> -> vector<2x4x8x8xf32>
    %13 = vector.shape_cast %12 : vector<2x4x8x8xf32> to vector<8x8x8xf32>
    %14 = vector.extract_strided_slice %5 {offsets = [0, 64], sizes = [16, 32], strides = [1, 1]} : vector<16x96xf32> to vector<16x32xf32>
    %15 = vector.shape_cast %14 : vector<16x32xf32> to vector<2x8x4x8xf32>
    %16 = tpu.transpose %15, [0, 2, 1, 3] : vector<2x8x4x8xf32> -> vector<2x4x8x8xf32>
    %17 = vector.shape_cast %16 : vector<2x4x8x8xf32> to vector<8x8x8xf32>
    "tpu.trace_start"() <{level = 10 : i32, message = "bqd,bkd->bqk"}> : () -> ()
    %cst_5 = arith.constant dense<0.000000e+00> : vector<8x8x8xf32>
    %18 = tpu.matmul %9, %13, %cst_5 {dimension_numbers = #tpu.dot_dimension_numbers<[2], [2], [1], [1], [0, 0, 0, 1, 1, 1], [0], [0]>} : vector<8x8x8xf32>, vector<8x8x8xf32>, vector<8x8x8xf32> -> vector<8x8x8xf32>
    "tpu.trace_stop"() : () -> ()
    %cst_6 = arith.constant 0.353553385 : f32
    %19 = vector.broadcast %cst_6 : f32 to vector<8x8x8xf32>
    %20 = arith.mulf %18, %19 : vector<8x8x8xf32>
    %cst_7 = arith.constant dense<0xFF800000> : vector<8x8xf32>
    %21 = vector.multi_reduction <maximumf>, %20, %cst_7 [2] : vector<8x8x8xf32> to vector<8x8xf32>
    %22 = vector.shape_cast %21 : vector<8x8xf32> to vector<8x8x1xf32>
    %23 = vector.broadcast %22 : vector<8x8x1xf32> to vector<8x8x8xf32>
    %24 = arith.subf %20, %23 : vector<8x8x8xf32>
    %25 = math.exp %24 : vector<8x8x8xf32>
    %cst_8 = arith.constant dense<0.000000e+00> : vector<8x8xf32>
    %26 = vector.multi_reduction <add>, %25, %cst_8 [2] : vector<8x8x8xf32> to vector<8x8xf32>
    %27 = vector.shape_cast %26 : vector<8x8xf32> to vector<8x8x1xf32>
    %28 = vector.broadcast %27 : vector<8x8x1xf32> to vector<8x8x8xf32>
    %29 = arith.divf %25, %28 : vector<8x8x8xf32>
    "tpu.trace_start"() <{level = 10 : i32, message = "bqk,bkd->bqd"}> : () -> ()
    %cst_9 = arith.constant dense<0.000000e+00> : vector<8x8x8xf32>
    %30 = tpu.matmul %29, %17, %cst_9 {dimension_numbers = #tpu.dot_dimension_numbers<[2], [1], [1], [2], [0, 0, 0, 1, 1, 2], [0], [0]>} : vector<8x8x8xf32>, vector<8x8x8xf32>, vector<8x8x8xf32> -> vector<8x8x8xf32>
    "tpu.trace_stop"() : () -> ()
    %31 = vector.shape_cast %30 : vector<8x8x8xf32> to vector<2x4x8x8xf32>
    %32 = tpu.transpose %31, [0, 2, 1, 3] : vector<2x4x8x8xf32> -> vector<2x8x4x8xf32>
    %33 = vector.shape_cast %32 : vector<2x8x4x8xf32> to vector<16x32xf32>
    %c0_10 = arith.constant 0 : index
    %c0_11 = arith.constant 0 : index
    %34 = vector.load %arg4[%c0_10, %c0_11] : memref<32x32xf32, #tpu.memory_space<vmem>>, vector<32x32xf32>
    %cst_12 = arith.constant dense<0.000000e+00> : vector<16x32xf32>
    %35 = tpu.matmul %33, %34, %cst_12 {dimension_numbers = #tpu.dot_dimension_numbers<[1], [0], [0], [1], [0, 0, 1, 1], [], []>} : vector<16x32xf32>, vector<32x32xf32>, vector<16x32xf32> -> vector<16x32xf32>
    %c0_13 = arith.constant 0 : index
    %c0_14 = arith.constant 0 : index
    %36 = vector.load %arg5[%c0_13, %c0_14] : memref<1x32xf32, #tpu.memory_space<vmem>>, vector<1x32xf32>
    %37 = vector.broadcast %36 : vector<1x32xf32> to vector<16x32xf32>
    %38 = arith.addf %35, %37 : vector<16x32xf32>
    %39 = vector.extract_strided_slice %0 {offsets = [0, 0], sizes = [16, 32], strides = [1, 1]} : vector<16x96xf32> to vector<16x32xf32>
    %40 = arith.addf %38, %39 : vector<16x32xf32>
    %cst_15 = arith.constant dense<0.000000e+00> : vector<16xf32>
    %41 = vector.multi_reduction <add>, %40, %cst_15 [1] : vector<16x32xf32> to vector<16xf32>
    %42 = vector.shape_cast %41 : vector<16xf32> to vector<16x1xf32>
    %cst_16 = arith.constant 3.200000e+01 : f32
    %43 = vector.broadcast %cst_16 : f32 to vector<16x1xf32>
    %44 = arith.divf %42, %43 : vector<16x1xf32>
    %45 = vector.broadcast %44 : vector<16x1xf32> to vector<16x32xf32>
    %46 = arith.subf %40, %45 : vector<16x32xf32>
    %47 = arith.mulf %46, %46 : vector<16x32xf32>
    %cst_17 = arith.constant dense<0.000000e+00> : vector<16xf32>
    %48 = vector.multi_reduction <add>, %47, %cst_17 [1] : vector<16x32xf32> to vector<16xf32>
    %49 = vector.shape_cast %48 : vector<16xf32> to vector<16x1xf32>
    %cst_18 = arith.constant 3.200000e+01 : f32
    %50 = vector.broadcast %cst_18 : f32 to vector<16x1xf32>
    %51 = arith.divf %49, %50 : vector<16x1xf32>
    %cst_19 = arith.constant 9.99999974E-6 : f32
    %52 = vector.broadcast %cst_19 : f32 to vector<16x1xf32>
    %53 = arith.addf %51, %52 : vector<16x1xf32>
    %54 = math.rsqrt %53 : vector<16x1xf32>
    %55 = vector.broadcast %54 : vector<16x1xf32> to vector<16x32xf32>
    %56 = arith.mulf %46, %55 : vector<16x32xf32>
    %c0_20 = arith.constant 0 : index
    %c0_21 = arith.constant 0 : index
    %57 = vector.load %arg6[%c0_20, %c0_21] : memref<1x32xf32, #tpu.memory_space<vmem>>, vector<1x32xf32>
    %58 = vector.broadcast %57 : vector<1x32xf32> to vector<16x32xf32>
    %59 = arith.mulf %56, %58 : vector<16x32xf32>
    %c0_22 = arith.constant 0 : index
    %c0_23 = arith.constant 0 : index
    %60 = vector.load %arg7[%c0_22, %c0_23] : memref<1x32xf32, #tpu.memory_space<vmem>>, vector<1x32xf32>
    %61 = vector.broadcast %60 : vector<1x32xf32> to vector<16x32xf32>
    %62 = arith.addf %59, %61 : vector<16x32xf32>
    %c0_24 = arith.constant 0 : index
    %c0_25 = arith.constant 0 : index
    %63 = vector.load %arg8[%c0_24, %c0_25] : memref<16x32xf32, #tpu.memory_space<vmem>>, vector<16x32xf32>
    tpu.vector_store %arg8[%c0_24, %c0_25], %62 {strides = array<i32>} : memref<16x32xf32, #tpu.memory_space<vmem>>, vector<16x32xf32>,
    return
  }
  func.func @transform_0(%arg0: i32) -> (i32, i32) {
    %c0_i32 = arith.constant 0 : i32
    %c0_i32_0 = arith.constant 0 : i32
    return %arg0, %c0_i32 : i32, i32
  }
  func.func @transform_1(%arg0: i32) -> (i32, i32) {
    %c0_i32 = arith.constant 0 : i32
    %c0_i32_0 = arith.constant 0 : i32
    %c0_i32_1 = arith.constant 0 : i32
    return %c0_i32, %c0_i32_0 : i32, i32
  }
  func.func @transform_2(%arg0: i32) -> (i32, i32) {
    %c0_i32 = arith.constant 0 : i32
    %c0_i32_0 = arith.constant 0 : i32
    %c0_i32_1 = arith.constant 0 : i32
    return %c0_i32, %c0_i32_0 : i32, i32
  }
  func.func @transform_3(%arg0: i32) -> (i32, i32) {
    %c0_i32 = arith.constant 0 : i32
    %c0_i32_0 = arith.constant 0 : i32
    %c0_i32_1 = arith.constant 0 : i32
    return %c0_i32, %c0_i32_0 : i32, i32
  }
  func.func @transform_4(%arg0: i32) -> (i32, i32) {
    %c0_i32 = arith.constant 0 : i32
    %c0_i32_0 = arith.constant 0 : i32
    %c0_i32_1 = arith.constant 0 : i32
    return %c0_i32, %c0_i32_0 : i32, i32
  }
  func.func @transform_5(%arg0: i32) -> (i32, i32) {
    %c0_i32 = arith.constant 0 : i32
    %c0_i32_0 = arith.constant 0 : i32
    %c0_i32_1 = arith.constant 0 : i32
    return %c0_i32, %c0_i32_0 : i32, i32
  }
  func.func @transform_6(%arg0: i32) -> (i32, i32) {
    %c0_i32 = arith.constant 0 : i32
    %c0_i32_0 = arith.constant 0 : i32
    %c0_i32_1 = arith.constant 0 : i32
    return %c0_i32, %c0_i32_0 : i32, i32
  }
  func.func @transform_7(%arg0: i32) -> (i32, i32) {
    %c0_i32 = arith.constant 0 : i32
    %c0_i32_0 = arith.constant 0 : i32
    return %arg0, %c0_i32 : i32, i32
  }
}

</mosaic_0001>

<llo_original>
// kernel: attention_forward.1
$region0: #{attention_forward.1}
  #allocation0 [shape = 'u32[]', space=smem, size = 0x4, offset = 0x4, fixed_abs, tag = 'smem constant byte address 0x4 - core index']
  #allocation1 [shape = 'u32[144,128]{1,0:T(1,128)}', space=vmem, size = 0x12000, scoped, tag = 'internal scratch']
  %s0 = inlined_call_operand.vmem [shape: f32[16,96], index: 0, kind: input, shape index: {}]
  %s1 = inlined_call_operand.hbm [shape: f32[96,96], index: 1, kind: input, shape index: {}]
  %s2 = inlined_call_operand.vmem [shape: f32[1,96], index: 2, kind: input, shape index: {}]
  %s3 = inlined_call_operand.vmem [shape: f32[32,32], index: 3, kind: input, shape index: {}]
  %s4 = inlined_call_operand.vmem [shape: f32[1,32], index: 4, kind: input, shape index: {}]
  %s5 = inlined_call_operand.vmem [shape: f32[1,32], index: 5, kind: input, shape index: {}]
  %s6 = inlined_call_operand.vmem [shape: f32[1,32], index: 6, kind: input, shape index: {}]
  %s7 = inlined_call_operand.hbm [shape: f32[16,32], index: 7, kind: output, shape index: {}]
  %s8 = sld [smem:[#allocation0]]
  $region42: #{attention_forward.1} parent=0
    _
  %s10 = ssub.s32 1, %s8
  %s11 = scalar_select 0, %s10, %s8
  $region1: #{attention_forward.1} parent=0
    #allocation2 [shape = 'u8[49152]{0}', space=vmem, size = 0xc000, scoped, tag = 'input window, operand 1, single buffered']
    #allocation3 [shape = 's32[1]{0}', space=sflag, size = 0x4, scoped, tag = 'scoped memory for attention_forward.1']
    #allocation4 [shape = 's32[1]{0}', space=sflag, size = 0x4, scoped, tag = 'scoped memory for attention_forward.1']
    #allocation5 [shape = 'u8[8192]{0}', space=vmem, size = 0x2000, scoped, tag = 'output window, operand 0, single buffered']
    %12 = vsyncpa [#allocation3], 0
    %13 = vsyncpa [#allocation4], 0
    // Predicated region
    $region2: #{attention_forward.1} parent=1 // pred_check
      _
    $region3: #{attention_forward.1} parent=1 // pred_check_branch
      %15 = sbr.rel (0) target = $region5
    $region4: #{attention_forward.1} parent=1 // pred_region
      _
    $region5: #{attention_forward.1} parent=1 // pred_fallthru
      _
    // Predicated region
    $region6: #{attention_forward.1} parent=1 // pred_check
      _
    $region7: #{attention_forward.1} parent=1 // pred_check_branch
      %17 = sbr.rel (0) target = $region9
    $region8: #{attention_forward.1} parent=1 // pred_region
      %s19 = ssub.s32 1536, 1536
      %20 = vsyncadd [#allocation3], %s19
      %s21 = sshll.u32 [#allocation2], 4
      %s22 = int_to_ptr.vmem [resolvable:$true] %s21
      %27 = dma.hbm_to_vmem [thread:$0]  %s1, 1536, %s22, [#allocation3], 128, 128, 8
    $region9: #{attention_forward.1} parent=1 // pred_fallthru
      _
    // Predicated region
    $region10: #{attention_forward.1} parent=1 // pred_check
      _
    $region11: #{attention_forward.1} parent=1 // pred_check_branch
      %29 = sbr.rel (0) target = $region13
    $region12: #{attention_forward.1} parent=1 // pred_region
      _
    $region13: #{attention_forward.1} parent=1 // pred_fallthru
      _
    // Predicated region
    $region14: #{attention_forward.1} parent=1 // pred_check
      _
    $region15: #{attention_forward.1} parent=1 // pred_check_branch
      %31 = sbr.rel (0) target = $region17
    $region16: #{attention_forward.1} parent=1 // pred_region
      _
    $region17: #{attention_forward.1} parent=1 // pred_fallthru
      _
    // Predicated region
    $region18: #{attention_forward.1} parent=1 // pred_check
      _
    $region19: #{attention_forward.1} parent=1 // pred_check_branch
      %33 = sbr.rel (0) target = $region21
    $region20: #{attention_forward.1} parent=1 // pred_region
      _
    $region21: #{attention_forward.1} parent=1 // pred_fallthru
      _
    // Predicated region
    $region22: #{attention_forward.1} parent=1 // pred_check
      _
    $region23: #{attention_forward.1} parent=1 // pred_check_branch
      %35 = sbr.rel (0) target = $region25
    $region24: #{attention_forward.1} parent=1 // pred_region
      _
    $region25: #{attention_forward.1} parent=1 // pred_fallthru
      _
    // Predicated region
    $region26: #{attention_forward.1} parent=1 // pred_check
      _
    $region27: #{attention_forward.1} parent=1 // pred_check_branch
      %37 = sbr.rel (0) target = $region29
    $region28: #{attention_forward.1} parent=1 // pred_region
      _
    $region29: #{attention_forward.1} parent=1 // pred_fallthru
      _
    // Predicated region
    $region30: #{attention_forward.1} parent=1 // pred_check
      _
    $region31: #{attention_forward.1} parent=1 // pred_check_branch
      %39 = sbr.rel (0) target = $region33
    $region32: #{attention_forward.1} parent=1 // pred_region
      %40 = dma.done [#allocation3], 1536
    $region33: #{attention_forward.1} parent=1 // pred_fallthru
      _
    %v41 = vld [vmem:[%s0] sm:$0xff]
    %v42 = vld [vmem:[%s0 + $0x8] sm:$0xff]
    %v43 = vld [vmem:[#allocation2] sm:$0xff]
    %v44 = vld [vmem:[#allocation2 + $0x8] sm:$0xff]
    %v45 = vld [vmem:[#allocation2 + $0x10] sm:$0xff]
    %v46 = vld [vmem:[#allocation2 + $0x18] sm:$0xff]
    %v47 = vld [vmem:[#allocation2 + $0x20] sm:$0xff]
    %v48 = vld [vmem:[#allocation2 + $0x28] sm:$0xff]
    %v49 = vld [vmem:[#allocation2 + $0x30] sm:$0xff]
    %v50 = vld [vmem:[#allocation2 + $0x38] sm:$0xff]
    %v51 = vld [vmem:[#allocation2 + $0x40] sm:$0xff]
    %v52 = vld [vmem:[#allocation2 + $0x48] sm:$0xff]
    %v53 = vld [vmem:[#allocation2 + $0x50] sm:$0xff]
    %v54 = vld [vmem:[#allocation2 + $0x58] sm:$0xff]
    %v55 = vld [vmem:[%s2] sm:$0x1]
    %v57 = vlaneseq
    %v58 = vshrl.u32 %v57, 7
    %v59 = vsub.s32 0, %v58
    %v60 = vrot.slane %v55, %v59
    %vm62 = vcmask 785408
    %v64 = vsel %vm62, %v41, 0
    %v67 = vsel %vm62, %v42, 0
    %69 = vmatprep.subr.mxu0 0.0
    %70 = vmatpush1.msra.mxu0 %v43
    %71 = vmatprep.subr.mxu0 0.0
    %72 = vmatpush1.msra.mxu0 %v44
    %73 = vmatprep.subr.mxu0 0.0
    %74 = vmatpush1.msra.mxu0 %v45
    %75 = vmatprep.subr.mxu0 0.0
    %76 = vmatpush1.msra.mxu0 %v46
    %77 = vmatprep.subr.mxu0 0.0
    %78 = vmatpush1.msra.mxu0 %v47
    %79 = vmatprep.subr.mxu0 0.0
    %80 = vmatpush1.msra.mxu0 %v48
    %81 = vmatprep.subr.mxu0 0.0
    %82 = vmatpush1.msra.mxu0 %v49
    %83 = vmatprep.subr.mxu0 0.0
    %84 = vmatpush1.msra.mxu0 %v50
    %85 = vmatprep.subr.mxu0 0.0
    %86 = vmatpush1.msra.mxu0 %v51
    %87 = vmatprep.subr.mxu0 0.0
    %88 = vmatpush1.msra.mxu0 %v52
    %89 = vmatprep.subr.mxu0 0.0
    %90 = vmatpush1.msra.mxu0 %v53
    %91 = vmatprep.subr.mxu0 0.0
    %92 = vmatpush1.msra.mxu0 %v54
    %93 = vmatprep.subr.mxu0 0.0
    %94 = vmatpush1.msra.mxu0 0.0
    %95 = vmatprep.subr.mxu0 0.0
    %96 = vmatpush1.msra.mxu0 0.0
    %97 = vmatprep.subr.mxu0 0.0
    %98 = vmatpush1.msra.mxu0 0.0
    %99 = vmatprep.subr.mxu0 0.0
    %100 = vmatpush1.msra.mxu0 0.0
    %101 = vmatprep.subr.mxu0 0.0
    %102 = vmatpush1.msra.mxu0 0.0
    %103 = vmatprep.subr.mxu0 0.0
    %104 = vmatpush1.msra.mxu0 0.0
    %105 = vmatprep.subr.mxu0 0.0
    %106 = vmatpush1.msra.mxu0 0.0
    %107 = vmatprep.subr.mxu0 0.0
    %108 = vmatpush1.msra.mxu0 0.0
    %109 = vmatprep.subr.mxu0 0.0
    %110 = vmatpush1.msra.mxu0 0.0
    %111 = vmatprep.subr.mxu0 0.0
    %112 = vmatpush1.msra.mxu0 0.0
    %113 = vmatprep.subr.mxu0 0.0
    %114 = vmatpush1.msra.mxu0 0.0
    %115 = vmatprep.subr.mxu0 0.0
    %116 = vmatpush1.msra.mxu0 0.0
    %117 = vmatprep.subr.mxu0 0.0
    %118 = vmatpush1.msra.mxu0 0.0
    %119 = vmatprep.subr.mxu0 0.0
    %120 = vmatpush1.msra.mxu0 0.0
    %121 = vmatprep.subr.mxu0 0.0
    %122 = vmatpush1.msra.mxu0 0.0
    %123 = vmatprep.subr.mxu0 0.0
    %124 = vmatpush1.msra.mxu0 0.0
    %125 = vmatprep.subr.mxu0 0.0
    %126 = vmatpush1.msra.mxu0 0.0
    %127 = vmatprep.subr.mxu0 0.0
    %128 = vmatpush1.msra.mxu0 0.0
    %129 = vmatprep.subr.mxu0 0.0
    %130 = vmatpush1.msra.mxu0 0.0
    %131 = vmatprep.subr.mxu0 0.0
    %132 = vmatpush1.msra.mxu0 0.0
    %133 = vmatprep.mubr.f32.mxu0 0.0
    %134 = vmatmul.mubr.f32.gmra.mrb[0].mxu0 %v64
    %v135 = vpop.f32.mrb[0].mxu0
    %v136 = vadd.f32 %v60, %v135
    %v137 = vpop.f32.mrb[0].mxu0
    %138 = vmatprep.mubr.f32.mxu0 0.0
    %139 = vmatmul.mubr.f32.gmra.mrb[0].mxu0 %v67
    %v140 = vpop.f32.mrb[0].mxu0
    %v141 = vadd.f32 %v60, %v140
    %v142 = vpop.f32.mrb[0].mxu0
    %143 = vdwg.mxu0
    %146 = vrot.lane.b32.xlu0 %v136, 120
    %v147 = vpop.permute.xlu0 %146
    %148 = vrot.lane.b32.xlu0 %v141, 120
    %v149 = vpop.permute.xlu0 %148
    %152 = vrot.lane.b32.xlu0 %v136, 112
    %v153 = vpop.permute.xlu0 %152
    %154 = vrot.lane.b32.xlu0 %v141, 112
    %v155 = vpop.permute.xlu0 %154
    %158 = vrot.lane.b32.xlu0 %v136, 104
    %v159 = vpop.permute.xlu0 %158
    %160 = vrot.lane.b32.xlu0 %v141, 104
    %v161 = vpop.permute.xlu0 %160
    %v164 = vcombine.low %v136, %v153
    %v165 = vcombine.high %v136, %v153
    %v167 = vunpack.c.l.s4 1983009808
    %v168 = vunpack.c.0.s8 %v167
    %v169 = vlaneseq
    %v170 = vshrl.u32 %v169, 7
    %v171 = vsub.s32 %v168, %v170
    %v172 = vrot.slane %v164, %v171
    %v174 = vunpack.c.l.s4 1983009808
    %v175 = vunpack.c.0.s8 %v174
    %v176 = vlaneseq
    %v177 = vshrl.u32 %v176, 7
    %v178 = vsub.s32 %v175, %v177
    %v179 = vrot.slane %v165, %v178
    %v180 = vcombine.low %v147, %v159
    %v181 = vcombine.high %v147, %v159
    %v183 = vunpack.c.l.s4 1983009808
    %v184 = vunpack.c.0.s8 %v183
    %v185 = vlaneseq
    %v186 = vshrl.u32 %v185, 7
    %v187 = vsub.s32 %v184, %v186
    %v188 = vrot.slane %v180, %v187
    %v190 = vunpack.c.l.s4 1983009808
    %v191 = vunpack.c.0.s8 %v190
    %v192 = vlaneseq
    %v193 = vshrl.u32 %v192, 7
    %v194 = vsub.s32 %v191, %v193
    %v195 = vrot.slane %v181, %v194
    %v196 = vcombine.low %v172, %v188
    %v197 = vcombine.high %v172, %v188
    %v199 = vunpack.c.l.s4 1934713408
    %v200 = vunpack.c.0.s8 %v199
    %v201 = vlaneseq
    %v202 = vshrl.u32 %v201, 7
    %v203 = vsub.s32 %v200, %v202
    %v204 = vrot.slane %v196, %v203
    %v206 = vunpack.c.l.s4 1934713408
    %v207 = vunpack.c.0.s8 %v206
    %v208 = vlaneseq
    %v209 = vshrl.u32 %v208, 7
    %v210 = vsub.s32 %v207, %v209
    %v211 = vrot.slane %v197, %v210
    %v212 = vcombine.low %v179, %v195
    %v213 = vcombine.high %v179, %v195
    %v215 = vunpack.c.l.s4 1934713408
    %v216 = vunpack.c.0.s8 %v215
    %v217 = vlaneseq
    %v218 = vshrl.u32 %v217, 7
    %v219 = vsub.s32 %v216, %v218
    %v220 = vrot.slane %v212, %v219
    %v222 = vunpack.c.l.s4 1934713408
    %v223 = vunpack.c.0.s8 %v222
    %v224 = vlaneseq
    %v225 = vshrl.u32 %v224, 7
    %v226 = vsub.s32 %v223, %v225
    %v227 = vrot.slane %v213, %v226
    %v228 = vcombine.high %v204, 0.0
    %v229 = vcombine.high %v211, 0.0
    %v230 = vcombine.high %v220, 0.0
    %v231 = vcombine.high %v227, 0.0
    %v232 = vcombine.low %v141, %v155
    %v233 = vcombine.high %v141, %v155
    %v235 = vunpack.c.l.s4 1983009808
    %v236 = vunpack.c.0.s8 %v235
    %v237 = vlaneseq
    %v238 = vshrl.u32 %v237, 7
    %v239 = vsub.s32 %v236, %v238
    %v240 = vrot.slane %v232, %v239
    %v242 = vunpack.c.l.s4 1983009808
    %v243 = vunpack.c.0.s8 %v242
    %v244 = vlaneseq
    %v245 = vshrl.u32 %v244, 7
    %v246 = vsub.s32 %v243, %v245
    %v247 = vrot.slane %v233, %v246
    %v248 = vcombine.low %v149, %v161
    %v249 = vcombine.high %v149, %v161
    %v251 = vunpack.c.l.s4 1983009808
    %v252 = vunpack.c.0.s8 %v251
    %v253 = vlaneseq
    %v254 = vshrl.u32 %v253, 7
    %v255 = vsub.s32 %v252, %v254
    %v256 = vrot.slane %v248, %v255
    %v258 = vunpack.c.l.s4 1983009808
    %v259 = vunpack.c.0.s8 %v258
    %v260 = vlaneseq
    %v261 = vshrl.u32 %v260, 7
    %v262 = vsub.s32 %v259, %v261
    %v263 = vrot.slane %v249, %v262
    %v264 = vcombine.low %v240, %v256
    %v265 = vcombine.high %v240, %v256
    %v267 = vunpack.c.l.s4 1934713408
    %v268 = vunpack.c.0.s8 %v267
    %v269 = vlaneseq
    %v270 = vshrl.u32 %v269, 7
    %v271 = vsub.s32 %v268, %v270
    %v272 = vrot.slane %v264, %v271
    %v274 = vunpack.c.l.s4 1934713408
    %v275 = vunpack.c.0.s8 %v274
    %v276 = vlaneseq
    %v277 = vshrl.u32 %v276, 7
    %v278 = vsub.s32 %v275, %v277
    %v279 = vrot.slane %v265, %v278
    %v280 = vcombine.low %v247, %v263
    %v281 = vcombine.high %v247, %v263
    %v283 = vunpack.c.l.s4 1934713408
    %v284 = vunpack.c.0.s8 %v283
    %v285 = vlaneseq
    %v286 = vshrl.u32 %v285, 7
    %v287 = vsub.s32 %v284, %v286
    %v288 = vrot.slane %v280, %v287
    %v290 = vunpack.c.l.s4 1934713408
    %v291 = vunpack.c.0.s8 %v290
    %v292 = vlaneseq
    %v293 = vshrl.u32 %v292, 7
    %v294 = vsub.s32 %v291, %v293
    %v295 = vrot.slane %v281, %v294
    %v296 = vcombine.high %v272, 0.0
    %v297 = vcombine.high %v279, 0.0
    %v298 = vcombine.high %v288, 0.0
    %v299 = vcombine.high %v295, 0.0
    %v300 = vcombine.low %v204, %v211
    %v302 = vunpack.c.l.s4 1983009808
    %v303 = vunpack.c.0.s8 %v302
    %v304 = vlaneseq
    %v305 = vshrl.u32 %v304, 7
    %v306 = vsub.s32 %v303, %v305
    %v307 = vrot.slane %v300, %v306
    %v308 = vcombine.low %v228, %v229
    %v310 = vunpack.c.l.s4 1983009808
    %v311 = vunpack.c.0.s8 %v310
    %v312 = vlaneseq
    %v313 = vshrl.u32 %v312, 7
    %v314 = vsub.s32 %v311, %v313
    %v315 = vrot.slane %v308, %v314
    %v316 = vcombine.low %v220, %v227
    %v318 = vunpack.c.l.s4 1983009808
    %v319 = vunpack.c.0.s8 %v318
    %v320 = vlaneseq
    %v321 = vshrl.u32 %v320, 7
    %v322 = vsub.s32 %v319, %v321
    %v323 = vrot.slane %v316, %v322
    %v324 = vcombine.low %v230, %v231
    %v326 = vunpack.c.l.s4 1983009808
    %v327 = vunpack.c.0.s8 %v326
    %v328 = vlaneseq
    %v329 = vshrl.u32 %v328, 7
    %v330 = vsub.s32 %v327, %v329
    %v331 = vrot.slane %v324, %v330
    %v332 = vcombine.low %v307, %v315
    %v333 = vcombine.high %v307, %v315
    %v335 = vunpack.c.l.s4 1934713408
    %v336 = vunpack.c.0.s8 %v335
    %v337 = vlaneseq
    %v338 = vshrl.u32 %v337, 7
    %v339 = vsub.s32 %v336, %v338
    %v340 = vrot.slane %v332, %v339
    %v342 = vunpack.c.l.s4 1934713408
    %v343 = vunpack.c.0.s8 %v342
    %v344 = vlaneseq
    %v345 = vshrl.u32 %v344, 7
    %v346 = vsub.s32 %v343, %v345
    %v347 = vrot.slane %v333, %v346
    %v348 = vcombine.low %v323, %v331
    %v349 = vcombine.high %v323, %v331
    %v351 = vunpack.c.l.s4 1934713408
    %v352 = vunpack.c.0.s8 %v351
    %v353 = vlaneseq
    %v354 = vshrl.u32 %v353, 7
    %v355 = vsub.s32 %v352, %v354
    %v356 = vrot.slane %v348, %v355
    %v358 = vunpack.c.l.s4 1934713408
    %v359 = vunpack.c.0.s8 %v358
    %v360 = vlaneseq
    %v361 = vshrl.u32 %v360, 7
    %v362 = vsub.s32 %v359, %v361
    %v363 = vrot.slane %v349, %v362
    %v364 = vcombine.low %v340, %v356
    %v365 = vcombine.high %v340, %v356
    %v366 = vcombine.low %v347, %v363
    %v367 = vcombine.high %v347, %v363
    %v368 = vcombine.low %v272, %v279
    %v370 = vunpack.c.l.s4 1983009808
    %v371 = vunpack.c.0.s8 %v370
    %v372 = vlaneseq
    %v373 = vshrl.u32 %v372, 7
    %v374 = vsub.s32 %v371, %v373
    %v375 = vrot.slane %v368, %v374
    %v376 = vcombine.low %v296, %v297
    %v378 = vunpack.c.l.s4 1983009808
    %v379 = vunpack.c.0.s8 %v378
    %v380 = vlaneseq
    %v381 = vshrl.u32 %v380, 7
    %v382 = vsub.s32 %v379, %v381
    %v383 = vrot.slane %v376, %v382
    %v384 = vcombine.low %v288, %v295
    %v386 = vunpack.c.l.s4 1983009808
    %v387 = vunpack.c.0.s8 %v386
    %v388 = vlaneseq
    %v389 = vshrl.u32 %v388, 7
    %v390 = vsub.s32 %v387, %v389
    %v391 = vrot.slane %v384, %v390
    %v392 = vcombine.low %v298, %v299
    %v394 = vunpack.c.l.s4 1983009808
    %v395 = vunpack.c.0.s8 %v394
    %v396 = vlaneseq
    %v397 = vshrl.u32 %v396, 7
    %v398 = vsub.s32 %v395, %v397
    %v399 = vrot.slane %v392, %v398
    %v400 = vcombine.low %v375, %v383
    %v401 = vcombine.high %v375, %v383
    %v403 = vunpack.c.l.s4 1934713408
    %v404 = vunpack.c.0.s8 %v403
    %v405 = vlaneseq
    %v406 = vshrl.u32 %v405, 7
    %v407 = vsub.s32 %v404, %v406
    %v408 = vrot.slane %v400, %v407
    %v410 = vunpack.c.l.s4 1934713408
    %v411 = vunpack.c.0.s8 %v410
    %v412 = vlaneseq
    %v413 = vshrl.u32 %v412, 7
    %v414 = vsub.s32 %v411, %v413
    %v415 = vrot.slane %v401, %v414
    %v416 = vcombine.low %v391, %v399
    %v417 = vcombine.high %v391, %v399
    %v419 = vunpack.c.l.s4 1934713408
    %v420 = vunpack.c.0.s8 %v419
    %v421 = vlaneseq
    %v422 = vshrl.u32 %v421, 7
    %v423 = vsub.s32 %v420, %v422
    %v424 = vrot.slane %v416, %v423
    %v426 = vunpack.c.l.s4 1934713408
    %v427 = vunpack.c.0.s8 %v426
    %v428 = vlaneseq
    %v429 = vshrl.u32 %v428, 7
    %v430 = vsub.s32 %v427, %v429
    %v431 = vrot.slane %v417, %v430
    %v432 = vcombine.low %v408, %v424
    %v433 = vcombine.high %v408, %v424
    %v434 = vcombine.low %v415, %v431
    %v435 = vcombine.high %v415, %v431
    %436 = vrot.lane.b32.xlu0 %v136, 96
    %v437 = vpop.permute.xlu0 %436
    %438 = vrot.lane.b32.xlu0 %v141, 96
    %v439 = vpop.permute.xlu0 %438
    %440 = vrot.lane.b32.xlu0 %v147, 96
    %v441 = vpop.permute.xlu0 %440
    %442 = vrot.lane.b32.xlu0 %v149, 96
    %v443 = vpop.permute.xlu0 %442
    %444 = vrot.lane.b32.xlu0 %v153, 96
    %v445 = vpop.permute.xlu0 %444
    %446 = vrot.lane.b32.xlu0 %v155, 96
    %v447 = vpop.permute.xlu0 %446
    %448 = vrot.lane.b32.xlu0 %v159, 96
    %v449 = vpop.permute.xlu0 %448
    %450 = vrot.lane.b32.xlu0 %v161, 96
    %v451 = vpop.permute.xlu0 %450
    %v460 = vcombine.low %v437, %v445
    %v461 = vcombine.high %v437, %v445
    %v463 = vunpack.c.l.s4 1983009808
    %v464 = vunpack.c.0.s8 %v463
    %v465 = vlaneseq
    %v466 = vshrl.u32 %v465, 7
    %v467 = vsub.s32 %v464, %v466
    %v468 = vrot.slane %v460, %v467
    %v470 = vunpack.c.l.s4 1983009808
    %v471 = vunpack.c.0.s8 %v470
    %v472 = vlaneseq
    %v473 = vshrl.u32 %v472, 7
    %v474 = vsub.s32 %v471, %v473
    %v475 = vrot.slane %v461, %v474
    %v476 = vcombine.low %v441, %v449
    %v477 = vcombine.high %v441, %v449
    %v479 = vunpack.c.l.s4 1983009808
    %v480 = vunpack.c.0.s8 %v479
    %v481 = vlaneseq
    %v482 = vshrl.u32 %v481, 7
    %v483 = vsub.s32 %v480, %v482
    %v484 = vrot.slane %v476, %v483
    %v486 = vunpack.c.l.s4 1983009808
    %v487 = vunpack.c.0.s8 %v486
    %v488 = vlaneseq
    %v489 = vshrl.u32 %v488, 7
    %v490 = vsub.s32 %v487, %v489
    %v491 = vrot.slane %v477, %v490
    %v492 = vcombine.low %v468, %v484
    %v493 = vcombine.high %v468, %v484
    %v495 = vunpack.c.l.s4 1934713408
    %v496 = vunpack.c.0.s8 %v495
    %v497 = vlaneseq
    %v498 = vshrl.u32 %v497, 7
    %v499 = vsub.s32 %v496, %v498
    %v500 = vrot.slane %v492, %v499
    %v502 = vunpack.c.l.s4 1934713408
    %v503 = vunpack.c.0.s8 %v502
    %v504 = vlaneseq
    %v505 = vshrl.u32 %v504, 7
    %v506 = vsub.s32 %v503, %v505
    %v507 = vrot.slane %v493, %v506
    %v508 = vcombine.low %v475, %v491
    %v509 = vcombine.high %v475, %v491
    %v511 = vunpack.c.l.s4 1934713408
    %v512 = vunpack.c.0.s8 %v511
    %v513 = vlaneseq
    %v514 = vshrl.u32 %v513, 7
    %v515 = vsub.s32 %v512, %v514
    %v516 = vrot.slane %v508, %v515
    %v518 = vunpack.c.l.s4 1934713408
    %v519 = vunpack.c.0.s8 %v518
    %v520 = vlaneseq
    %v521 = vshrl.u32 %v520, 7
    %v522 = vsub.s32 %v519, %v521
    %v523 = vrot.slane %v509, %v522
    %v524 = vcombine.high %v500, 0.0
    %v525 = vcombine.high %v507, 0.0
    %v526 = vcombine.high %v516, 0.0
    %v527 = vcombine.high %v523, 0.0
    %v528 = vcombine.low %v439, %v447
    %v529 = vcombine.high %v439, %v447
    %v531 = vunpack.c.l.s4 1983009808
    %v532 = vunpack.c.0.s8 %v531
    %v533 = vlaneseq
    %v534 = vshrl.u32 %v533, 7
    %v535 = vsub.s32 %v532, %v534
    %v536 = vrot.slane %v528, %v535
    %v538 = vunpack.c.l.s4 1983009808
    %v539 = vunpack.c.0.s8 %v538
    %v540 = vlaneseq
    %v541 = vshrl.u32 %v540, 7
    %v542 = vsub.s32 %v539, %v541
    %v543 = vrot.slane %v529, %v542
    %v544 = vcombine.low %v443, %v451
    %v545 = vcombine.high %v443, %v451
    %v547 = vunpack.c.l.s4 1983009808
    %v548 = vunpack.c.0.s8 %v547
    %v549 = vlaneseq
    %v550 = vshrl.u32 %v549, 7
    %v551 = vsub.s32 %v548, %v550
    %v552 = vrot.slane %v544, %v551
    %v554 = vunpack.c.l.s4 1983009808
    %v555 = vunpack.c.0.s8 %v554
    %v556 = vlaneseq
    %v557 = vshrl.u32 %v556, 7
    %v558 = vsub.s32 %v555, %v557
    %v559 = vrot.slane %v545, %v558
    %v560 = vcombine.low %v536, %v552
    %v561 = vcombine.high %v536, %v552
    %v563 = vunpack.c.l.s4 1934713408
    %v564 = vunpack.c.0.s8 %v563
    %v565 = vlaneseq
    %v566 = vshrl.u32 %v565, 7
    %v567 = vsub.s32 %v564, %v566
    %v568 = vrot.slane %v560, %v567
    %v570 = vunpack.c.l.s4 1934713408
    %v571 = vunpack.c.0.s8 %v570
    %v572 = vlaneseq
    %v573 = vshrl.u32 %v572, 7
    %v574 = vsub.s32 %v571, %v573
    %v575 = vrot.slane %v561, %v574
    %v576 = vcombine.low %v543, %v559
    %v577 = vcombine.high %v543, %v559
    %v579 = vunpack.c.l.s4 1934713408
    %v580 = vunpack.c.0.s8 %v579
    %v581 = vlaneseq
    %v582 = vshrl.u32 %v581, 7
    %v583 = vsub.s32 %v580, %v582
    %v584 = vrot.slane %v576, %v583
    %v586 = vunpack.c.l.s4 1934713408
    %v587 = vunpack.c.0.s8 %v586
    %v588 = vlaneseq
    %v589 = vshrl.u32 %v588, 7
    %v590 = vsub.s32 %v587, %v589
    %v591 = vrot.slane %v577, %v590
    %v592 = vcombine.high %v568, 0.0
    %v593 = vcombine.high %v575, 0.0
    %v594 = vcombine.high %v584, 0.0
    %v595 = vcombine.high %v591, 0.0
    %v596 = vcombine.low %v500, %v507
    %v598 = vunpack.c.l.s4 1983009808
    %v599 = vunpack.c.0.s8 %v598
    %v600 = vlaneseq
    %v601 = vshrl.u32 %v600, 7
    %v602 = vsub.s32 %v599, %v601
    %v603 = vrot.slane %v596, %v602
    %v604 = vcombine.low %v524, %v525
    %v606 = vunpack.c.l.s4 1983009808
    %v607 = vunpack.c.0.s8 %v606
    %v608 = vlaneseq
    %v609 = vshrl.u32 %v608, 7
    %v610 = vsub.s32 %v607, %v609
    %v611 = vrot.slane %v604, %v610
    %v612 = vcombine.low %v516, %v523
    %v614 = vunpack.c.l.s4 1983009808
    %v615 = vunpack.c.0.s8 %v614
    %v616 = vlaneseq
    %v617 = vshrl.u32 %v616, 7
    %v618 = vsub.s32 %v615, %v617
    %v619 = vrot.slane %v612, %v618
    %v620 = vcombine.low %v526, %v527
    %v622 = vunpack.c.l.s4 1983009808
    %v623 = vunpack.c.0.s8 %v622
    %v624 = vlaneseq
    %v625 = vshrl.u32 %v624, 7
    %v626 = vsub.s32 %v623, %v625
    %v627 = vrot.slane %v620, %v626
    %v628 = vcombine.low %v603, %v611
    %v629 = vcombine.high %v603, %v611
    %v631 = vunpack.c.l.s4 1934713408
    %v632 = vunpack.c.0.s8 %v631
    %v633 = vlaneseq
    %v634 = vshrl.u32 %v633, 7
    %v635 = vsub.s32 %v632, %v634
    %v636 = vrot.slane %v628, %v635
    %v638 = vunpack.c.l.s4 1934713408
    %v639 = vunpack.c.0.s8 %v638
    %v640 = vlaneseq
    %v641 = vshrl.u32 %v640, 7
    %v642 = vsub.s32 %v639, %v641
    %v643 = vrot.slane %v629, %v642
    %v644 = vcombine.low %v619, %v627
    %v645 = vcombine.high %v619, %v627
    %v647 = vunpack.c.l.s4 1934713408
    %v648 = vunpack.c.0.s8 %v647
    %v649 = vlaneseq
    %v650 = vshrl.u32 %v649, 7
    %v651 = vsub.s32 %v648, %v650
    %v652 = vrot.slane %v644, %v651
    %v654 = vunpack.c.l.s4 1934713408
    %v655 = vunpack.c.0.s8 %v654
    %v656 = vlaneseq
    %v657 = vshrl.u32 %v656, 7
    %v658 = vsub.s32 %v655, %v657
    %v659 = vrot.slane %v645, %v658
    %v660 = vcombine.low %v636, %v652
    %v661 = vcombine.high %v636, %v652
    %v662 = vcombine.low %v643, %v659
    %v663 = vcombine.high %v643, %v659
    %v664 = vcombine.low %v568, %v575
    %v666 = vunpack.c.l.s4 1983009808
    %v667 = vunpack.c.0.s8 %v666
    %v668 = vlaneseq
    %v669 = vshrl.u32 %v668, 7
    %v670 = vsub.s32 %v667, %v669
    %v671 = vrot.slane %v664, %v670
    %v672 = vcombine.low %v592, %v593
    %v674 = vunpack.c.l.s4 1983009808
    %v675 = vunpack.c.0.s8 %v674
    %v676 = vlaneseq
    %v677 = vshrl.u32 %v676, 7
    %v678 = vsub.s32 %v675, %v677
    %v679 = vrot.slane %v672, %v678
    %v680 = vcombine.low %v584, %v591
    %v682 = vunpack.c.l.s4 1983009808
    %v683 = vunpack.c.0.s8 %v682
    %v684 = vlaneseq
    %v685 = vshrl.u32 %v684, 7
    %v686 = vsub.s32 %v683, %v685
    %v687 = vrot.slane %v680, %v686
    %v688 = vcombine.low %v594, %v595
    %v690 = vunpack.c.l.s4 1983009808
    %v691 = vunpack.c.0.s8 %v690
    %v692 = vlaneseq
    %v693 = vshrl.u32 %v692, 7
    %v694 = vsub.s32 %v691, %v693
    %v695 = vrot.slane %v688, %v694
    %v696 = vcombine.low %v671, %v679
    %v697 = vcombine.high %v671, %v679
    %v699 = vunpack.c.l.s4 1934713408
    %v700 = vunpack.c.0.s8 %v699
    %v701 = vlaneseq
    %v702 = vshrl.u32 %v701, 7
    %v703 = vsub.s32 %v700, %v702
    %v704 = vrot.slane %v696, %v703
    %v706 = vunpack.c.l.s4 1934713408
    %v707 = vunpack.c.0.s8 %v706
    %v708 = vlaneseq
    %v709 = vshrl.u32 %v708, 7
    %v710 = vsub.s32 %v707, %v709
    %v711 = vrot.slane %v697, %v710
    %v712 = vcombine.low %v687, %v695
    %v713 = vcombine.high %v687, %v695
    %v715 = vunpack.c.l.s4 1934713408
    %v716 = vunpack.c.0.s8 %v715
    %v717 = vlaneseq
    %v718 = vshrl.u32 %v717, 7
    %v719 = vsub.s32 %v716, %v718
    %v720 = vrot.slane %v712, %v719
    %v722 = vunpack.c.l.s4 1934713408
    %v723 = vunpack.c.0.s8 %v722
    %v724 = vlaneseq
    %v725 = vshrl.u32 %v724, 7
    %v726 = vsub.s32 %v723, %v725
    %v727 = vrot.slane %v713, %v726
    %v728 = vcombine.low %v704, %v720
    %v729 = vcombine.high %v704, %v720
    %v730 = vcombine.low %v711, %v727
    %v731 = vcombine.high %v711, %v727
    %732 = vrot.lane.b32.xlu0 %v136, 64
    %v733 = vpop.permute.xlu0 %732
    %734 = vrot.lane.b32.xlu0 %v141, 64
    %v735 = vpop.permute.xlu0 %734
    %736 = vrot.lane.b32.xlu0 %v147, 64
    %v737 = vpop.permute.xlu0 %736
    %738 = vrot.lane.b32.xlu0 %v149, 64
    %v739 = vpop.permute.xlu0 %738
    %740 = vrot.lane.b32.xlu0 %v153, 64
    %v741 = vpop.permute.xlu0 %740
    %742 = vrot.lane.b32.xlu0 %v155, 64
    %v743 = vpop.permute.xlu0 %742
    %744 = vrot.lane.b32.xlu0 %v159, 64
    %v745 = vpop.permute.xlu0 %744
    %746 = vrot.lane.b32.xlu0 %v161, 64
    %v747 = vpop.permute.xlu0 %746
    %v756 = vcombine.low %v733, %v741
    %v757 = vcombine.high %v733, %v741
    %v759 = vunpack.c.l.s4 1983009808
    %v760 = vunpack.c.0.s8 %v759
    %v761 = vlaneseq
    %v762 = vshrl.u32 %v761, 7
    %v763 = vsub.s32 %v760, %v762
    %v764 = vrot.slane %v756, %v763
    %v766 = vunpack.c.l.s4 1983009808
    %v767 = vunpack.c.0.s8 %v766
    %v768 = vlaneseq
    %v769 = vshrl.u32 %v768, 7
    %v770 = vsub.s32 %v767, %v769
    %v771 = vrot.slane %v757, %v770
    %v772 = vcombine.low %v737, %v745
    %v773 = vcombine.high %v737, %v745
    %v775 = vunpack.c.l.s4 1983009808
    %v776 = vunpack.c.0.s8 %v775
    %v777 = vlaneseq
    %v778 = vshrl.u32 %v777, 7
    %v779 = vsub.s32 %v776, %v778
    %v780 = vrot.slane %v772, %v779
    %v782 = vunpack.c.l.s4 1983009808
    %v783 = vunpack.c.0.s8 %v782
    %v784 = vlaneseq
    %v785 = vshrl.u32 %v784, 7
    %v786 = vsub.s32 %v783, %v785
    %v787 = vrot.slane %v773, %v786
    %v788 = vcombine.low %v764, %v780
    %v789 = vcombine.high %v764, %v780
    %v791 = vunpack.c.l.s4 1934713408
    %v792 = vunpack.c.0.s8 %v791
    %v793 = vlaneseq
    %v794 = vshrl.u32 %v793, 7
    %v795 = vsub.s32 %v792, %v794
    %v796 = vrot.slane %v788, %v795
    %v798 = vunpack.c.l.s4 1934713408
    %v799 = vunpack.c.0.s8 %v798
    %v800 = vlaneseq
    %v801 = vshrl.u32 %v800, 7
    %v802 = vsub.s32 %v799, %v801
    %v803 = vrot.slane %v789, %v802
    %v804 = vcombine.low %v771, %v787
    %v805 = vcombine.high %v771, %v787
    %v807 = vunpack.c.l.s4 1934713408
    %v808 = vunpack.c.0.s8 %v807
    %v809 = vlaneseq
    %v810 = vshrl.u32 %v809, 7
    %v811 = vsub.s32 %v808, %v810
    %v812 = vrot.slane %v804, %v811
    %v814 = vunpack.c.l.s4 1934713408
    %v815 = vunpack.c.0.s8 %v814
    %v816 = vlaneseq
    %v817 = vshrl.u32 %v816, 7
    %v818 = vsub.s32 %v815, %v817
    %v819 = vrot.slane %v805, %v818
    %v820 = vcombine.high %v796, 0.0
    %v821 = vcombine.high %v803, 0.0
    %v822 = vcombine.high %v812, 0.0
    %v823 = vcombine.high %v819, 0.0
    %v824 = vcombine.low %v735, %v743
    %v825 = vcombine.high %v735, %v743
    %v827 = vunpack.c.l.s4 1983009808
    %v828 = vunpack.c.0.s8 %v827
    %v829 = vlaneseq
    %v830 = vshrl.u32 %v829, 7
    %v831 = vsub.s32 %v828, %v830
    %v832 = vrot.slane %v824, %v831
    %v834 = vunpack.c.l.s4 1983009808
    %v835 = vunpack.c.0.s8 %v834
    %v836 = vlaneseq
    %v837 = vshrl.u32 %v836, 7
    %v838 = vsub.s32 %v835, %v837
    %v839 = vrot.slane %v825, %v838
    %v840 = vcombine.low %v739, %v747
    %v841 = vcombine.high %v739, %v747
    %v843 = vunpack.c.l.s4 1983009808
    %v844 = vunpack.c.0.s8 %v843
    %v845 = vlaneseq
    %v846 = vshrl.u32 %v845, 7
    %v847 = vsub.s32 %v844, %v846
    %v848 = vrot.slane %v840, %v847
    %v850 = vunpack.c.l.s4 1983009808
    %v851 = vunpack.c.0.s8 %v850
    %v852 = vlaneseq
    %v853 = vshrl.u32 %v852, 7
    %v854 = vsub.s32 %v851, %v853
    %v855 = vrot.slane %v841, %v854
    %v856 = vcombine.low %v832, %v848
    %v857 = vcombine.high %v832, %v848
    %v859 = vunpack.c.l.s4 1934713408
    %v860 = vunpack.c.0.s8 %v859
    %v861 = vlaneseq
    %v862 = vshrl.u32 %v861, 7
    %v863 = vsub.s32 %v860, %v862
    %v864 = vrot.slane %v856, %v863
    %v866 = vunpack.c.l.s4 1934713408
    %v867 = vunpack.c.0.s8 %v866
    %v868 = vlaneseq
    %v869 = vshrl.u32 %v868, 7
    %v870 = vsub.s32 %v867, %v869
    %v871 = vrot.slane %v857, %v870
    %v872 = vcombine.low %v839, %v855
    %v873 = vcombine.high %v839, %v855
    %v875 = vunpack.c.l.s4 1934713408
    %v876 = vunpack.c.0.s8 %v875
    %v877 = vlaneseq
    %v878 = vshrl.u32 %v877, 7
    %v879 = vsub.s32 %v876, %v878
    %v880 = vrot.slane %v872, %v879
    %v882 = vunpack.c.l.s4 1934713408
    %v883 = vunpack.c.0.s8 %v882
    %v884 = vlaneseq
    %v885 = vshrl.u32 %v884, 7
    %v886 = vsub.s32 %v883, %v885
    %v887 = vrot.slane %v873, %v886
    %v888 = vcombine.high %v864, 0.0
    %v889 = vcombine.high %v871, 0.0
    %v890 = vcombine.high %v880, 0.0
    %v891 = vcombine.high %v887, 0.0
    %v892 = vcombine.low %v796, %v803
    %v894 = vunpack.c.l.s4 1983009808
    %v895 = vunpack.c.0.s8 %v894
    %v896 = vlaneseq
    %v897 = vshrl.u32 %v896, 7
    %v898 = vsub.s32 %v895, %v897
    %v899 = vrot.slane %v892, %v898
    %v900 = vcombine.low %v820, %v821
    %v902 = vunpack.c.l.s4 1983009808
    %v903 = vunpack.c.0.s8 %v902
    %v904 = vlaneseq
    %v905 = vshrl.u32 %v904, 7
    %v906 = vsub.s32 %v903, %v905
    %v907 = vrot.slane %v900, %v906
    %v908 = vcombine.low %v812, %v819
    %v910 = vunpack.c.l.s4 1983009808
    %v911 = vunpack.c.0.s8 %v910
    %v912 = vlaneseq
    %v913 = vshrl.u32 %v912, 7
    %v914 = vsub.s32 %v911, %v913
    %v915 = vrot.slane %v908, %v914
    %v916 = vcombine.low %v822, %v823
    %v918 = vunpack.c.l.s4 1983009808
    %v919 = vunpack.c.0.s8 %v918
    %v920 = vlaneseq
    %v921 = vshrl.u32 %v920, 7
    %v922 = vsub.s32 %v919, %v921
    %v923 = vrot.slane %v916, %v922
    %v924 = vcombine.low %v899, %v907
    %v925 = vcombine.high %v899, %v907
    %v927 = vunpack.c.l.s4 1934713408
    %v928 = vunpack.c.0.s8 %v927
    %v929 = vlaneseq
    %v930 = vshrl.u32 %v929, 7
    %v931 = vsub.s32 %v928, %v930
    %v932 = vrot.slane %v924, %v931
    %v934 = vunpack.c.l.s4 1934713408
    %v935 = vunpack.c.0.s8 %v934
    %v936 = vlaneseq
    %v937 = vshrl.u32 %v936, 7
    %v938 = vsub.s32 %v935, %v937
    %v939 = vrot.slane %v925, %v938
    %v940 = vcombine.low %v915, %v923
    %v941 = vcombine.high %v915, %v923
    %v943 = vunpack.c.l.s4 1934713408
    %v944 = vunpack.c.0.s8 %v943
    %v945 = vlaneseq
    %v946 = vshrl.u32 %v945, 7
    %v947 = vsub.s32 %v944, %v946
    %v948 = vrot.slane %v940, %v947
    %v950 = vunpack.c.l.s4 1934713408
    %v951 = vunpack.c.0.s8 %v950
    %v952 = vlaneseq
    %v953 = vshrl.u32 %v952, 7
    %v954 = vsub.s32 %v951, %v953
    %v955 = vrot.slane %v941, %v954
    %v956 = vcombine.low %v932, %v948
    %v957 = vcombine.high %v932, %v948
    %v958 = vcombine.low %v939, %v955
    %v959 = vcombine.high %v939, %v955
    %v960 = vcombine.low %v864, %v871
    %v962 = vunpack.c.l.s4 1983009808
    %v963 = vunpack.c.0.s8 %v962
    %v964 = vlaneseq
    %v965 = vshrl.u32 %v964, 7
    %v966 = vsub.s32 %v963, %v965
    %v967 = vrot.slane %v960, %v966
    %v968 = vcombine.low %v888, %v889
    %v970 = vunpack.c.l.s4 1983009808
    %v971 = vunpack.c.0.s8 %v970
    %v972 = vlaneseq
    %v973 = vshrl.u32 %v972, 7
    %v974 = vsub.s32 %v971, %v973
    %v975 = vrot.slane %v968, %v974
    %v976 = vcombine.low %v880, %v887
    %v978 = vunpack.c.l.s4 1983009808
    %v979 = vunpack.c.0.s8 %v978
    %v980 = vlaneseq
    %v981 = vshrl.u32 %v980, 7
    %v982 = vsub.s32 %v979, %v981
    %v983 = vrot.slane %v976, %v982
    %v984 = vcombine.low %v890, %v891
    %v986 = vunpack.c.l.s4 1983009808
    %v987 = vunpack.c.0.s8 %v986
    %v988 = vlaneseq
    %v989 = vshrl.u32 %v988, 7
    %v990 = vsub.s32 %v987, %v989
    %v991 = vrot.slane %v984, %v990
    %v992 = vcombine.low %v967, %v975
    %v993 = vcombine.high %v967, %v975
    %v995 = vunpack.c.l.s4 1934713408
    %v996 = vunpack.c.0.s8 %v995
    %v997 = vlaneseq
    %v998 = vshrl.u32 %v997, 7
    %v999 = vsub.s32 %v996, %v998
    %v1000 = vrot.slane %v992, %v999
    %v1002 = vunpack.c.l.s4 1934713408
    %v1003 = vunpack.c.0.s8 %v1002
    %v1004 = vlaneseq
    %v1005 = vshrl.u32 %v1004, 7
    %v1006 = vsub.s32 %v1003, %v1005
    %v1007 = vrot.slane %v993, %v1006
    %v1008 = vcombine.low %v983, %v991
    %v1009 = vcombine.high %v983, %v991
    %v1011 = vunpack.c.l.s4 1934713408
    %v1012 = vunpack.c.0.s8 %v1011
    %v1013 = vlaneseq
    %v1014 = vshrl.u32 %v1013, 7
    %v1015 = vsub.s32 %v1012, %v1014
    %v1016 = vrot.slane %v1008, %v1015
    %v1018 = vunpack.c.l.s4 1934713408
    %v1019 = vunpack.c.0.s8 %v1018
    %v1020 = vlaneseq
    %v1021 = vshrl.u32 %v1020, 7
    %v1022 = vsub.s32 %v1019, %v1021
    %v1023 = vrot.slane %v1009, %v1022
    %v1024 = vcombine.low %v1000, %v1016
    %v1025 = vcombine.high %v1000, %v1016
    %v1026 = vcombine.low %v1007, %v1023
    %v1027 = vcombine.high %v1007, %v1023
    %vm1028 = vcmask 64512
    %v1030 = vsel %vm1028, %v364, 0
    %v1033 = vsel %vm1028, %v660, 0
    %1035 = vmatprep.subr.mxu0 0.0
    %1036 = vmatpush1.xpose.msra.mxu0 %v1033
    %1037 = vmatprep.subr.mxu0 0.0
    %1038 = vmatpush1.xpose.msra.mxu0 0.0
    %1039 = vmatprep.subr.mxu0 0.0
    %1040 = vmatpush1.xpose.msra.mxu0 0.0
    %1041 = vmatprep.subr.mxu0 0.0
    %1042 = vmatpush1.xpose.msra.mxu0 0.0
    %1043 = vmatprep.subr.mxu0 0.0
    %1044 = vmatpush1.xpose.msra.mxu0 0.0
    %1045 = vmatprep.subr.mxu0 0.0
    %1046 = vmatpush1.xpose.msra.mxu0 0.0
    %1047 = vmatprep.subr.mxu0 0.0
    %1048 = vmatpush1.xpose.msra.mxu0 0.0
    %1049 = vmatprep.subr.mxu0 0.0
    %1050 = vmatpush1.xpose.msra.mxu0 0.0
    %1051 = vmatprep.subr.mxu0 0.0
    %1052 = vmatpush1.xpose.msra.mxu0 0.0
    %1053 = vmatprep.subr.mxu0 0.0
    %1054 = vmatpush1.xpose.msra.mxu0 0.0
    %1055 = vmatprep.subr.mxu0 0.0
    %1056 = vmatpush1.xpose.msra.mxu0 0.0
    %1057 = vmatprep.subr.mxu0 0.0
    %1058 = vmatpush1.xpose.msra.mxu0 0.0
    %1059 = vmatprep.subr.mxu0 0.0
    %1060 = vmatpush1.xpose.msra.mxu0 0.0
    %1061 = vmatprep.subr.mxu0 0.0
    %1062 = vmatpush1.xpose.msra.mxu0 0.0
    %1063 = vmatprep.subr.mxu0 0.0
    %1064 = vmatpush1.xpose.msra.mxu0 0.0
    %1065 = vmatprep.subr.mxu0 0.0
    %1066 = vmatpush1.xpose.msra.mxu0 0.0
    %1067 = vmatprep.subr.mxu0 0.0
    %1068 = vmatpush1.xpose.msra.mxu0 0.0
    %1069 = vmatprep.subr.mxu0 0.0
    %1070 = vmatpush1.xpose.msra.mxu0 0.0
    %1071 = vmatprep.subr.mxu0 0.0
    %1072 = vmatpush1.xpose.msra.mxu0 0.0
    %1073 = vmatprep.subr.mxu0 0.0
    %1074 = vmatpush1.xpose.msra.mxu0 0.0
    %1075 = vmatprep.subr.mxu0 0.0
    %1076 = vmatpush1.xpose.msra.mxu0 0.0
    %1077 = vmatprep.subr.mxu0 0.0
    %1078 = vmatpush1.xpose.msra.mxu0 0.0
    %1079 = vmatprep.subr.mxu0 0.0
    %1080 = vmatpush1.xpose.msra.mxu0 0.0
    %1081 = vmatprep.subr.mxu0 0.0
    %1082 = vmatpush1.xpose.msra.mxu0 0.0
    %1083 = vmatprep.subr.mxu0 0.0
    %1084 = vmatpush1.xpose.msra.mxu0 0.0
    %1085 = vmatprep.subr.mxu0 0.0
    %1086 = vmatpush1.xpose.msra.mxu0 0.0
    %1087 = vmatprep.subr.mxu0 0.0
    %1088 = vmatpush1.xpose.msra.mxu0 0.0
    %1089 = vmatprep.subr.mxu0 0.0
    %1090 = vmatpush1.xpose.msra.mxu0 0.0
    %1091 = vmatprep.subr.mxu0 0.0
    %1092 = vmatpush1.xpose.msra.mxu0 0.0
    %1093 = vmatprep.subr.mxu0 0.0
    %1094 = vmatpush1.xpose.msra.mxu0 0.0
    %1095 = vmatprep.subr.mxu0 0.0
    %1096 = vmatpush1.xpose.msra.mxu0 0.0
    %1097 = vmatprep.subr.mxu0 0.0
    %1098 = vmatpush1.xpose.msra.mxu0 0.0
    %1099 = vmatprep.mubr.f32.mxu0 0.0
    %1100 = vmatmul.mubr.f32.gmra.mrb[0].mxu0 %v1030
    %v1101 = vpop.f32.mrb[0].mxu0
    %v1102 = vadd.f32 0.0, %v1101
    %v1103 = vpop.f32.mrb[0].mxu0
    %1104 = vdwg.mxu0
    %v1106 = vsel %vm1028, %v365, 0
    %v1109 = vsel %vm1028, %v661, 0
    %1111 = vmatprep.subr.mxu0 0.0
    %1112 = vmatpush1.xpose.msra.mxu0 %v1109
    %1113 = vmatprep.subr.mxu0 0.0
    %1114 = vmatpush1.xpose.msra.mxu0 0.0
    %1115 = vmatprep.subr.mxu0 0.0
    %1116 = vmatpush1.xpose.msra.mxu0 0.0
    %1117 = vmatprep.subr.mxu0 0.0
    %1118 = vmatpush1.xpose.msra.mxu0 0.0
    %1119 = vmatprep.subr.mxu0 0.0
    %1120 = vmatpush1.xpose.msra.mxu0 0.0
    %1121 = vmatprep.subr.mxu0 0.0
    %1122 = vmatpush1.xpose.msra.mxu0 0.0
    %1123 = vmatprep.subr.mxu0 0.0
    %1124 = vmatpush1.xpose.msra.mxu0 0.0
    %1125 = vmatprep.subr.mxu0 0.0
    %1126 = vmatpush1.xpose.msra.mxu0 0.0
    %1127 = vmatprep.subr.mxu0 0.0
    %1128 = vmatpush1.xpose.msra.mxu0 0.0
    %1129 = vmatprep.subr.mxu0 0.0
    %1130 = vmatpush1.xpose.msra.mxu0 0.0
    %1131 = vmatprep.subr.mxu0 0.0
    %1132 = vmatpush1.xpose.msra.mxu0 0.0
    %1133 = vmatprep.subr.mxu0 0.0
    %1134 = vmatpush1.xpose.msra.mxu0 0.0
    %1135 = vmatprep.subr.mxu0 0.0
    %1136 = vmatpush1.xpose.msra.mxu0 0.0
    %1137 = vmatprep.subr.mxu0 0.0
    %1138 = vmatpush1.xpose.msra.mxu0 0.0
    %1139 = vmatprep.subr.mxu0 0.0
    %1140 = vmatpush1.xpose.msra.mxu0 0.0
    %1141 = vmatprep.subr.mxu0 0.0
    %1142 = vmatpush1.xpose.msra.mxu0 0.0
    %1143 = vmatprep.subr.mxu0 0.0
    %1144 = vmatpush1.xpose.msra.mxu0 0.0
    %1145 = vmatprep.subr.mxu0 0.0
    %1146 = vmatpush1.xpose.msra.mxu0 0.0
    %1147 = vmatprep.subr.mxu0 0.0
    %1148 = vmatpush1.xpose.msra.mxu0 0.0
    %1149 = vmatprep.subr.mxu0 0.0
    %1150 = vmatpush1.xpose.msra.mxu0 0.0
    %1151 = vmatprep.subr.mxu0 0.0
    %1152 = vmatpush1.xpose.msra.mxu0 0.0
    %1153 = vmatprep.subr.mxu0 0.0
    %1154 = vmatpush1.xpose.msra.mxu0 0.0
    %1155 = vmatprep.subr.mxu0 0.0
    %1156 = vmatpush1.xpose.msra.mxu0 0.0
    %1157 = vmatprep.subr.mxu0 0.0
    %1158 = vmatpush1.xpose.msra.mxu0 0.0
    %1159 = vmatprep.subr.mxu0 0.0
    %1160 = vmatpush1.xpose.msra.mxu0 0.0
    %1161 = vmatprep.subr.mxu0 0.0
    %1162 = vmatpush1.xpose.msra.mxu0 0.0
    %1163 = vmatprep.subr.mxu0 0.0
    %1164 = vmatpush1.xpose.msra.mxu0 0.0
    %1165 = vmatprep.subr.mxu0 0.0
    %1166 = vmatpush1.xpose.msra.mxu0 0.0
    %1167 = vmatprep.subr.mxu0 0.0
    %1168 = vmatpush1.xpose.msra.mxu0 0.0
    %1169 = vmatprep.subr.mxu0 0.0
    %1170 = vmatpush1.xpose.msra.mxu0 0.0
    %1171 = vmatprep.subr.mxu0 0.0
    %1172 = vmatpush1.xpose.msra.mxu0 0.0
    %1173 = vmatprep.subr.mxu0 0.0
    %1174 = vmatpush1.xpose.msra.mxu0 0.0
    %1175 = vmatprep.mubr.f32.mxu0 0.0
    %1176 = vmatmul.mubr.f32.gmra.mrb[0].mxu0 %v1106
    %v1177 = vpop.f32.mrb[0].mxu0
    %v1178 = vadd.f32 0.0, %v1177
    %v1179 = vpop.f32.mrb[0].mxu0
    %1180 = vdwg.mxu0
    %v1182 = vsel %vm1028, %v366, 0
    %v1185 = vsel %vm1028, %v662, 0
    %1187 = vmatprep.subr.mxu0 0.0
    %1188 = vmatpush1.xpose.msra.mxu0 %v1185
    %1189 = vmatprep.subr.mxu0 0.0
    %1190 = vmatpush1.xpose.msra.mxu0 0.0
    %1191 = vmatprep.subr.mxu0 0.0
    %1192 = vmatpush1.xpose.msra.mxu0 0.0
    %1193 = vmatprep.subr.mxu0 0.0
    %1194 = vmatpush1.xpose.msra.mxu0 0.0
    %1195 = vmatprep.subr.mxu0 0.0
    %1196 = vmatpush1.xpose.msra.mxu0 0.0
    %1197 = vmatprep.subr.mxu0 0.0
    %1198 = vmatpush1.xpose.msra.mxu0 0.0
    %1199 = vmatprep.subr.mxu0 0.0
    %1200 = vmatpush1.xpose.msra.mxu0 0.0
    %1201 = vmatprep.subr.mxu0 0.0
    %1202 = vmatpush1.xpose.msra.mxu0 0.0
    %1203 = vmatprep.subr.mxu0 0.0
    %1204 = vmatpush1.xpose.msra.mxu0 0.0
    %1205 = vmatprep.subr.mxu0 0.0
    %1206 = vmatpush1.xpose.msra.mxu0 0.0
    %1207 = vmatprep.subr.mxu0 0.0
    %1208 = vmatpush1.xpose.msra.mxu0 0.0
    %1209 = vmatprep.subr.mxu0 0.0
    %1210 = vmatpush1.xpose.msra.mxu0 0.0
    %1211 = vmatprep.subr.mxu0 0.0
    %1212 = vmatpush1.xpose.msra.mxu0 0.0
    %1213 = vmatprep.subr.mxu0 0.0
    %1214 = vmatpush1.xpose.msra.mxu0 0.0
    %1215 = vmatprep.subr.mxu0 0.0
    %1216 = vmatpush1.xpose.msra.mxu0 0.0
    %1217 = vmatprep.subr.mxu0 0.0
    %1218 = vmatpush1.xpose.msra.mxu0 0.0
    %1219 = vmatprep.subr.mxu0 0.0
    %1220 = vmatpush1.xpose.msra.mxu0 0.0
    %1221 = vmatprep.subr.mxu0 0.0
    %1222 = vmatpush1.xpose.msra.mxu0 0.0
    %1223 = vmatprep.subr.mxu0 0.0
    %1224 = vmatpush1.xpose.msra.mxu0 0.0
    %1225 = vmatprep.subr.mxu0 0.0
    %1226 = vmatpush1.xpose.msra.mxu0 0.0
    %1227 = vmatprep.subr.mxu0 0.0
    %1228 = vmatpush1.xpose.msra.mxu0 0.0
    %1229 = vmatprep.subr.mxu0 0.0
    %1230 = vmatpush1.xpose.msra.mxu0 0.0
    %1231 = vmatprep.subr.mxu0 0.0
    %1232 = vmatpush1.xpose.msra.mxu0 0.0
    %1233 = vmatprep.subr.mxu0 0.0
    %1234 = vmatpush1.xpose.msra.mxu0 0.0
    %1235 = vmatprep.subr.mxu0 0.0
    %1236 = vmatpush1.xpose.msra.mxu0 0.0
    %1237 = vmatprep.subr.mxu0 0.0
    %1238 = vmatpush1.xpose.msra.mxu0 0.0
    %1239 = vmatprep.subr.mxu0 0.0
    %1240 = vmatpush1.xpose.msra.mxu0 0.0
    %1241 = vmatprep.subr.mxu0 0.0
    %1242 = vmatpush1.xpose.msra.mxu0 0.0
    %1243 = vmatprep.subr.mxu0 0.0
    %1244 = vmatpush1.xpose.msra.mxu0 0.0
    %1245 = vmatprep.subr.mxu0 0.0
    %1246 = vmatpush1.xpose.msra.mxu0 0.0
    %1247 = vmatprep.subr.mxu0 0.0
    %1248 = vmatpush1.xpose.msra.mxu0 0.0
    %1249 = vmatprep.subr.mxu0 0.0
    %1250 = vmatpush1.xpose.msra.mxu0 0.0
    %1251 = vmatprep.mubr.f32.mxu0 0.0
    %1252 = vmatmul.mubr.f32.gmra.mrb[0].mxu0 %v1182
    %v1253 = vpop.f32.mrb[0].mxu0
    %v1254 = vadd.f32 0.0, %v1253
    %v1255 = vpop.f32.mrb[0].mxu0
    %1256 = vdwg.mxu0
    %v1258 = vsel %vm1028, %v367, 0
    %v1261 = vsel %vm1028, %v663, 0
    %1263 = vmatprep.subr.mxu0 0.0
    %1264 = vmatpush1.xpose.msra.mxu0 %v1261
    %1265 = vmatprep.subr.mxu0 0.0
    %1266 = vmatpush1.xpose.msra.mxu0 0.0
    %1267 = vmatprep.subr.mxu0 0.0
    %1268 = vmatpush1.xpose.msra.mxu0 0.0
    %1269 = vmatprep.subr.mxu0 0.0
    %1270 = vmatpush1.xpose.msra.mxu0 0.0
    %1271 = vmatprep.subr.mxu0 0.0
    %1272 = vmatpush1.xpose.msra.mxu0 0.0
    %1273 = vmatprep.subr.mxu0 0.0
    %1274 = vmatpush1.xpose.msra.mxu0 0.0
    %1275 = vmatprep.subr.mxu0 0.0
    %1276 = vmatpush1.xpose.msra.mxu0 0.0
    %1277 = vmatprep.subr.mxu0 0.0
    %1278 = vmatpush1.xpose.msra.mxu0 0.0
    %1279 = vmatprep.subr.mxu0 0.0
    %1280 = vmatpush1.xpose.msra.mxu0 0.0
    %1281 = vmatprep.subr.mxu0 0.0
    %1282 = vmatpush1.xpose.msra.mxu0 0.0
    %1283 = vmatprep.subr.mxu0 0.0
    %1284 = vmatpush1.xpose.msra.mxu0 0.0
    %1285 = vmatprep.subr.mxu0 0.0
    %1286 = vmatpush1.xpose.msra.mxu0 0.0
    %1287 = vmatprep.subr.mxu0 0.0
    %1288 = vmatpush1.xpose.msra.mxu0 0.0
    %1289 = vmatprep.subr.mxu0 0.0
    %1290 = vmatpush1.xpose.msra.mxu0 0.0
    %1291 = vmatprep.subr.mxu0 0.0
    %1292 = vmatpush1.xpose.msra.mxu0 0.0
    %1293 = vmatprep.subr.mxu0 0.0
    %1294 = vmatpush1.xpose.msra.mxu0 0.0
    %1295 = vmatprep.subr.mxu0 0.0
    %1296 = vmatpush1.xpose.msra.mxu0 0.0
    %1297 = vmatprep.subr.mxu0 0.0
    %1298 = vmatpush1.xpose.msra.mxu0 0.0
    %1299 = vmatprep.subr.mxu0 0.0
    %1300 = vmatpush1.xpose.msra.mxu0 0.0
    %1301 = vmatprep.subr.mxu0 0.0
    %1302 = vmatpush1.xpose.msra.mxu0 0.0
    %1303 = vmatprep.subr.mxu0 0.0
    %1304 = vmatpush1.xpose.msra.mxu0 0.0
    %1305 = vmatprep.subr.mxu0 0.0
    %1306 = vmatpush1.xpose.msra.mxu0 0.0
    %1307 = vmatprep.subr.mxu0 0.0
    %1308 = vmatpush1.xpose.msra.mxu0 0.0
    %1309 = vmatprep.subr.mxu0 0.0
    %1310 = vmatpush1.xpose.msra.mxu0 0.0
    %1311 = vmatprep.subr.mxu0 0.0
    %1312 = vmatpush1.xpose.msra.mxu0 0.0
    %1313 = vmatprep.subr.mxu0 0.0
    %1314 = vmatpush1.xpose.msra.mxu0 0.0
    %1315 = vmatprep.subr.mxu0 0.0
    %1316 = vmatpush1.xpose.msra.mxu0 0.0
    %1317 = vmatprep.subr.mxu0 0.0
    %1318 = vmatpush1.xpose.msra.mxu0 0.0
    %1319 = vmatprep.subr.mxu0 0.0
    %1320 = vmatpush1.xpose.msra.mxu0 0.0
    %1321 = vmatprep.subr.mxu0 0.0
    %1322 = vmatpush1.xpose.msra.mxu0 0.0
    %1323 = vmatprep.subr.mxu0 0.0
    %1324 = vmatpush1.xpose.msra.mxu0 0.0
    %1325 = vmatprep.subr.mxu0 0.0
    %1326 = vmatpush1.xpose.msra.mxu0 0.0
    %1327 = vmatprep.mubr.f32.mxu0 0.0
    %1328 = vmatmul.mubr.f32.gmra.mrb[0].mxu0 %v1258
    %v1329 = vpop.f32.mrb[0].mxu0
    %v1330 = vadd.f32 0.0, %v1329
    %v1331 = vpop.f32.mrb[0].mxu0
    %1332 = vdwg.mxu0
    %v1334 = vsel %vm1028, %v432, 0
    %v1337 = vsel %vm1028, %v728, 0
    %1339 = vmatprep.subr.mxu0 0.0
    %1340 = vmatpush1.xpose.msra.mxu0 %v1337
    %1341 = vmatprep.subr.mxu0 0.0
    %1342 = vmatpush1.xpose.msra.mxu0 0.0
    %1343 = vmatprep.subr.mxu0 0.0
    %1344 = vmatpush1.xpose.msra.mxu0 0.0
    %1345 = vmatprep.subr.mxu0 0.0
    %1346 = vmatpush1.xpose.msra.mxu0 0.0
    %1347 = vmatprep.subr.mxu0 0.0
    %1348 = vmatpush1.xpose.msra.mxu0 0.0
    %1349 = vmatprep.subr.mxu0 0.0
    %1350 = vmatpush1.xpose.msra.mxu0 0.0
    %1351 = vmatprep.subr.mxu0 0.0
    %1352 = vmatpush1.xpose.msra.mxu0 0.0
    %1353 = vmatprep.subr.mxu0 0.0
    %1354 = vmatpush1.xpose.msra.mxu0 0.0
    %1355 = vmatprep.subr.mxu0 0.0
    %1356 = vmatpush1.xpose.msra.mxu0 0.0
    %1357 = vmatprep.subr.mxu0 0.0
    %1358 = vmatpush1.xpose.msra.mxu0 0.0
    %1359 = vmatprep.subr.mxu0 0.0
    %1360 = vmatpush1.xpose.msra.mxu0 0.0
    %1361 = vmatprep.subr.mxu0 0.0
    %1362 = vmatpush1.xpose.msra.mxu0 0.0
    %1363 = vmatprep.subr.mxu0 0.0
    %1364 = vmatpush1.xpose.msra.mxu0 0.0
    %1365 = vmatprep.subr.mxu0 0.0
    %1366 = vmatpush1.xpose.msra.mxu0 0.0
    %1367 = vmatprep.subr.mxu0 0.0
    %1368 = vmatpush1.xpose.msra.mxu0 0.0
    %1369 = vmatprep.subr.mxu0 0.0
    %1370 = vmatpush1.xpose.msra.mxu0 0.0
    %1371 = vmatprep.subr.mxu0 0.0
    %1372 = vmatpush1.xpose.msra.mxu0 0.0
    %1373 = vmatprep.subr.mxu0 0.0
    %1374 = vmatpush1.xpose.msra.mxu0 0.0
    %1375 = vmatprep.subr.mxu0 0.0
    %1376 = vmatpush1.xpose.msra.mxu0 0.0
    %1377 = vmatprep.subr.mxu0 0.0
    %1378 = vmatpush1.xpose.msra.mxu0 0.0
    %1379 = vmatprep.subr.mxu0 0.0
    %1380 = vmatpush1.xpose.msra.mxu0 0.0
    %1381 = vmatprep.subr.mxu0 0.0
    %1382 = vmatpush1.xpose.msra.mxu0 0.0
    %1383 = vmatprep.subr.mxu0 0.0
    %1384 = vmatpush1.xpose.msra.mxu0 0.0
    %1385 = vmatprep.subr.mxu0 0.0
    %1386 = vmatpush1.xpose.msra.mxu0 0.0
    %1387 = vmatprep.subr.mxu0 0.0
    %1388 = vmatpush1.xpose.msra.mxu0 0.0
    %1389 = vmatprep.subr.mxu0 0.0
    %1390 = vmatpush1.xpose.msra.mxu0 0.0
    %1391 = vmatprep.subr.mxu0 0.0
    %1392 = vmatpush1.xpose.msra.mxu0 0.0
    %1393 = vmatprep.subr.mxu0 0.0
    %1394 = vmatpush1.xpose.msra.mxu0 0.0
    %1395 = vmatprep.subr.mxu0 0.0
    %1396 = vmatpush1.xpose.msra.mxu0 0.0
    %1397 = vmatprep.subr.mxu0 0.0
    %1398 = vmatpush1.xpose.msra.mxu0 0.0
    %1399 = vmatprep.subr.mxu0 0.0
    %1400 = vmatpush1.xpose.msra.mxu0 0.0
    %1401 = vmatprep.subr.mxu0 0.0
    %1402 = vmatpush1.xpose.msra.mxu0 0.0
    %1403 = vmatprep.mubr.f32.mxu0 0.0
    %1404 = vmatmul.mubr.f32.gmra.mrb[0].mxu0 %v1334
    %v1405 = vpop.f32.mrb[0].mxu0
    %v1406 = vadd.f32 0.0, %v1405
    %v1407 = vpop.f32.mrb[0].mxu0
    %1408 = vdwg.mxu0
    %v1410 = vsel %vm1028, %v433, 0
    %v1413 = vsel %vm1028, %v729, 0
    %1415 = vmatprep.subr.mxu0 0.0
    %1416 = vmatpush1.xpose.msra.mxu0 %v1413
    %1417 = vmatprep.subr.mxu0 0.0
    %1418 = vmatpush1.xpose.msra.mxu0 0.0
    %1419 = vmatprep.subr.mxu0 0.0
    %1420 = vmatpush1.xpose.msra.mxu0 0.0
    %1421 = vmatprep.subr.mxu0 0.0
    %1422 = vmatpush1.xpose.msra.mxu0 0.0
    %1423 = vmatprep.subr.mxu0 0.0
    %1424 = vmatpush1.xpose.msra.mxu0 0.0
    %1425 = vmatprep.subr.mxu0 0.0
    %1426 = vmatpush1.xpose.msra.mxu0 0.0
    %1427 = vmatprep.subr.mxu0 0.0
    %1428 = vmatpush1.xpose.msra.mxu0 0.0
    %1429 = vmatprep.subr.mxu0 0.0
    %1430 = vmatpush1.xpose.msra.mxu0 0.0
    %1431 = vmatprep.subr.mxu0 0.0
    %1432 = vmatpush1.xpose.msra.mxu0 0.0
    %1433 = vmatprep.subr.mxu0 0.0
    %1434 = vmatpush1.xpose.msra.mxu0 0.0
    %1435 = vmatprep.subr.mxu0 0.0
    %1436 = vmatpush1.xpose.msra.mxu0 0.0
    %1437 = vmatprep.subr.mxu0 0.0
    %1438 = vmatpush1.xpose.msra.mxu0 0.0
    %1439 = vmatprep.subr.mxu0 0.0
    %1440 = vmatpush1.xpose.msra.mxu0 0.0
    %1441 = vmatprep.subr.mxu0 0.0
    %1442 = vmatpush1.xpose.msra.mxu0 0.0
    %1443 = vmatprep.subr.mxu0 0.0
    %1444 = vmatpush1.xpose.msra.mxu0 0.0
    %1445 = vmatprep.subr.mxu0 0.0
    %1446 = vmatpush1.xpose.msra.mxu0 0.0
    %1447 = vmatprep.subr.mxu0 0.0
    %1448 = vmatpush1.xpose.msra.mxu0 0.0
    %1449 = vmatprep.subr.mxu0 0.0
    %1450 = vmatpush1.xpose.msra.mxu0 0.0
    %1451 = vmatprep.subr.mxu0 0.0
    %1452 = vmatpush1.xpose.msra.mxu0 0.0
    %1453 = vmatprep.subr.mxu0 0.0
    %1454 = vmatpush1.xpose.msra.mxu0 0.0
    %1455 = vmatprep.subr.mxu0 0.0
    %1456 = vmatpush1.xpose.msra.mxu0 0.0
    %1457 = vmatprep.subr.mxu0 0.0
    %1458 = vmatpush1.xpose.msra.mxu0 0.0
    %1459 = vmatprep.subr.mxu0 0.0
    %1460 = vmatpush1.xpose.msra.mxu0 0.0
    %1461 = vmatprep.subr.mxu0 0.0
    %1462 = vmatpush1.xpose.msra.mxu0 0.0
    %1463 = vmatprep.subr.mxu0 0.0
    %1464 = vmatpush1.xpose.msra.mxu0 0.0
    %1465 = vmatprep.subr.mxu0 0.0
    %1466 = vmatpush1.xpose.msra.mxu0 0.0
    %1467 = vmatprep.subr.mxu0 0.0
    %1468 = vmatpush1.xpose.msra.mxu0 0.0
    %1469 = vmatprep.subr.mxu0 0.0
    %1470 = vmatpush1.xpose.msra.mxu0 0.0
    %1471 = vmatprep.subr.mxu0 0.0
    %1472 = vmatpush1.xpose.msra.mxu0 0.0
    %1473 = vmatprep.subr.mxu0 0.0
    %1474 = vmatpush1.xpose.msra.mxu0 0.0
    %1475 = vmatprep.subr.mxu0 0.0
    %1476 = vmatpush1.xpose.msra.mxu0 0.0
    %1477 = vmatprep.subr.mxu0 0.0
    %1478 = vmatpush1.xpose.msra.mxu0 0.0
    %1479 = vmatprep.mubr.f32.mxu0 0.0
    %1480 = vmatmul.mubr.f32.gmra.mrb[0].mxu0 %v1410
    %v1481 = vpop.f32.mrb[0].mxu0
    %v1482 = vadd.f32 0.0, %v1481
    %v1483 = vpop.f32.mrb[0].mxu0
    %1484 = vdwg.mxu0
    %v1486 = vsel %vm1028, %v434, 0
    %v1489 = vsel %vm1028, %v730, 0
    %1491 = vmatprep.subr.mxu0 0.0
    %1492 = vmatpush1.xpose.msra.mxu0 %v1489
    %1493 = vmatprep.subr.mxu0 0.0
    %1494 = vmatpush1.xpose.msra.mxu0 0.0
    %1495 = vmatprep.subr.mxu0 0.0
    %1496 = vmatpush1.xpose.msra.mxu0 0.0
    %1497 = vmatprep.subr.mxu0 0.0
    %1498 = vmatpush1.xpose.msra.mxu0 0.0
    %1499 = vmatprep.subr.mxu0 0.0
    %1500 = vmatpush1.xpose.msra.mxu0 0.0
    %1501 = vmatprep.subr.mxu0 0.0
    %1502 = vmatpush1.xpose.msra.mxu0 0.0
    %1503 = vmatprep.subr.mxu0 0.0
    %1504 = vmatpush1.xpose.msra.mxu0 0.0
    %1505 = vmatprep.subr.mxu0 0.0
    %1506 = vmatpush1.xpose.msra.mxu0 0.0
    %1507 = vmatprep.subr.mxu0 0.0
    %1508 = vmatpush1.xpose.msra.mxu0 0.0
    %1509 = vmatprep.subr.mxu0 0.0
    %1510 = vmatpush1.xpose.msra.mxu0 0.0
    %1511 = vmatprep.subr.mxu0 0.0
    %1512 = vmatpush1.xpose.msra.mxu0 0.0
    %1513 = vmatprep.subr.mxu0 0.0
    %1514 = vmatpush1.xpose.msra.mxu0 0.0
    %1515 = vmatprep.subr.mxu0 0.0
    %1516 = vmatpush1.xpose.msra.mxu0 0.0
    %1517 = vmatprep.subr.mxu0 0.0
    %1518 = vmatpush1.xpose.msra.mxu0 0.0
    %1519 = vmatprep.subr.mxu0 0.0
    %1520 = vmatpush1.xpose.msra.mxu0 0.0
    %1521 = vmatprep.subr.mxu0 0.0
    %1522 = vmatpush1.xpose.msra.mxu0 0.0
    %1523 = vmatprep.subr.mxu0 0.0
    %1524 = vmatpush1.xpose.msra.mxu0 0.0
    %1525 = vmatprep.subr.mxu0 0.0
    %1526 = vmatpush1.xpose.msra.mxu0 0.0
    %1527 = vmatprep.subr.mxu0 0.0
    %1528 = vmatpush1.xpose.msra.mxu0 0.0
    %1529 = vmatprep.subr.mxu0 0.0
    %1530 = vmatpush1.xpose.msra.mxu0 0.0
    %1531 = vmatprep.subr.mxu0 0.0
    %1532 = vmatpush1.xpose.msra.mxu0 0.0
    %1533 = vmatprep.subr.mxu0 0.0
    %1534 = vmatpush1.xpose.msra.mxu0 0.0
    %1535 = vmatprep.subr.mxu0 0.0
    %1536 = vmatpush1.xpose.msra.mxu0 0.0
    %1537 = vmatprep.subr.mxu0 0.0
    %1538 = vmatpush1.xpose.msra.mxu0 0.0
    %1539 = vmatprep.subr.mxu0 0.0
    %1540 = vmatpush1.xpose.msra.mxu0 0.0
    %1541 = vmatprep.subr.mxu0 0.0
    %1542 = vmatpush1.xpose.msra.mxu0 0.0
    %1543 = vmatprep.subr.mxu0 0.0
    %1544 = vmatpush1.xpose.msra.mxu0 0.0
    %1545 = vmatprep.subr.mxu0 0.0
    %1546 = vmatpush1.xpose.msra.mxu0 0.0
    %1547 = vmatprep.subr.mxu0 0.0
    %1548 = vmatpush1.xpose.msra.mxu0 0.0
    %1549 = vmatprep.subr.mxu0 0.0
    %1550 = vmatpush1.xpose.msra.mxu0 0.0
    %1551 = vmatprep.subr.mxu0 0.0
    %1552 = vmatpush1.xpose.msra.mxu0 0.0
    %1553 = vmatprep.subr.mxu0 0.0
    %1554 = vmatpush1.xpose.msra.mxu0 0.0
    %1555 = vmatprep.mubr.f32.mxu0 0.0
    %1556 = vmatmul.mubr.f32.gmra.mrb[0].mxu0 %v1486
    %v1557 = vpop.f32.mrb[0].mxu0
    %v1558 = vadd.f32 0.0, %v1557
    %v1559 = vpop.f32.mrb[0].mxu0
    %1560 = vdwg.mxu0
    %v1562 = vsel %vm1028, %v435, 0
    %v1565 = vsel %vm1028, %v731, 0
    %1567 = vmatprep.subr.mxu0 0.0
    %1568 = vmatpush1.xpose.msra.mxu0 %v1565
    %1569 = vmatprep.subr.mxu0 0.0
    %1570 = vmatpush1.xpose.msra.mxu0 0.0
    %1571 = vmatprep.subr.mxu0 0.0
    %1572 = vmatpush1.xpose.msra.mxu0 0.0
    %1573 = vmatprep.subr.mxu0 0.0
    %1574 = vmatpush1.xpose.msra.mxu0 0.0
    %1575 = vmatprep.subr.mxu0 0.0
    %1576 = vmatpush1.xpose.msra.mxu0 0.0
    %1577 = vmatprep.subr.mxu0 0.0
    %1578 = vmatpush1.xpose.msra.mxu0 0.0
    %1579 = vmatprep.subr.mxu0 0.0
    %1580 = vmatpush1.xpose.msra.mxu0 0.0
    %1581 = vmatprep.subr.mxu0 0.0
    %1582 = vmatpush1.xpose.msra.mxu0 0.0
    %1583 = vmatprep.subr.mxu0 0.0
    %1584 = vmatpush1.xpose.msra.mxu0 0.0
    %1585 = vmatprep.subr.mxu0 0.0
    %1586 = vmatpush1.xpose.msra.mxu0 0.0
    %1587 = vmatprep.subr.mxu0 0.0
    %1588 = vmatpush1.xpose.msra.mxu0 0.0
    %1589 = vmatprep.subr.mxu0 0.0
    %1590 = vmatpush1.xpose.msra.mxu0 0.0
    %1591 = vmatprep.subr.mxu0 0.0
    %1592 = vmatpush1.xpose.msra.mxu0 0.0
    %1593 = vmatprep.subr.mxu0 0.0
    %1594 = vmatpush1.xpose.msra.mxu0 0.0
    %1595 = vmatprep.subr.mxu0 0.0
    %1596 = vmatpush1.xpose.msra.mxu0 0.0
    %1597 = vmatprep.subr.mxu0 0.0
    %1598 = vmatpush1.xpose.msra.mxu0 0.0
    %1599 = vmatprep.subr.mxu0 0.0
    %1600 = vmatpush1.xpose.msra.mxu0 0.0
    %1601 = vmatprep.subr.mxu0 0.0
    %1602 = vmatpush1.xpose.msra.mxu0 0.0
    %1603 = vmatprep.subr.mxu0 0.0
    %1604 = vmatpush1.xpose.msra.mxu0 0.0
    %1605 = vmatprep.subr.mxu0 0.0
    %1606 = vmatpush1.xpose.msra.mxu0 0.0
    %1607 = vmatprep.subr.mxu0 0.0
    %1608 = vmatpush1.xpose.msra.mxu0 0.0
    %1609 = vmatprep.subr.mxu0 0.0
    %1610 = vmatpush1.xpose.msra.mxu0 0.0
    %1611 = vmatprep.subr.mxu0 0.0
    %1612 = vmatpush1.xpose.msra.mxu0 0.0
    %1613 = vmatprep.subr.mxu0 0.0
    %1614 = vmatpush1.xpose.msra.mxu0 0.0
    %1615 = vmatprep.subr.mxu0 0.0
    %1616 = vmatpush1.xpose.msra.mxu0 0.0
    %1617 = vmatprep.subr.mxu0 0.0
    %1618 = vmatpush1.xpose.msra.mxu0 0.0
    %1619 = vmatprep.subr.mxu0 0.0
    %1620 = vmatpush1.xpose.msra.mxu0 0.0
    %1621 = vmatprep.subr.mxu0 0.0
    %1622 = vmatpush1.xpose.msra.mxu0 0.0
    %1623 = vmatprep.subr.mxu0 0.0
    %1624 = vmatpush1.xpose.msra.mxu0 0.0
    %1625 = vmatprep.subr.mxu0 0.0
    %1626 = vmatpush1.xpose.msra.mxu0 0.0
    %1627 = vmatprep.subr.mxu0 0.0
    %1628 = vmatpush1.xpose.msra.mxu0 0.0
    %1629 = vmatprep.subr.mxu0 0.0
    %1630 = vmatpush1.xpose.msra.mxu0 0.0
    %1631 = vmatprep.mubr.f32.mxu0 0.0
    %1632 = vmatmul.mubr.f32.gmra.mrb[0].mxu0 %v1562
    %v1633 = vpop.f32.mrb[0].mxu0
    %v1634 = vadd.f32 0.0, %v1633
    %v1635 = vpop.f32.mrb[0].mxu0
    %1636 = vdwg.mxu0
    %v1637 = vmul.f32 %v1102, 0.35355338
    %v1638 = vmul.f32 %v1178, 0.35355338
    %v1639 = vmul.f32 %v1254, 0.35355338
    %v1640 = vmul.f32 %v1330, 0.35355338
    %v1641 = vmul.f32 %v1406, 0.35355338
    %v1642 = vmul.f32 %v1482, 0.35355338
    %v1643 = vmul.f32 %v1558, 0.35355338
    %v1644 = vmul.f32 %v1634, 0.35355338
    %v1645 = vsel %vm1028, %v1637, -inf
    %1646 = vmax.xlane.f32.xlu0 %v1645
    %v1647 = vpop.xlane.xlu0 %1646
    %v1648 = vsel %vm1028, %v1638, -inf
    %1649 = vmax.xlane.f32.xlu0 %v1648
    %v1650 = vpop.xlane.xlu0 %1649
    %v1651 = vsel %vm1028, %v1639, -inf
    %1652 = vmax.xlane.f32.xlu0 %v1651
    %v1653 = vpop.xlane.xlu0 %1652
    %v1654 = vsel %vm1028, %v1640, -inf
    %1655 = vmax.xlane.f32.xlu0 %v1654
    %v1656 = vpop.xlane.xlu0 %1655
    %v1657 = vsel %vm1028, %v1641, -inf
    %1658 = vmax.xlane.f32.xlu0 %v1657
    %v1659 = vpop.xlane.xlu0 %1658
    %v1660 = vsel %vm1028, %v1642, -inf
    %1661 = vmax.xlane.f32.xlu0 %v1660
    %v1662 = vpop.xlane.xlu0 %1661
    %v1663 = vsel %vm1028, %v1643, -inf
    %1664 = vmax.xlane.f32.xlu0 %v1663
    %v1665 = vpop.xlane.xlu0 %1664
    %v1666 = vsel %vm1028, %v1644, -inf
    %1667 = vmax.xlane.f32.xlu0 %v1666
    %v1668 = vpop.xlane.xlu0 %1667
    %v1669 = vsub.f32 %v1637, %v1647
    %v1670 = vsub.f32 %v1638, %v1650
    %v1671 = vsub.f32 %v1639, %v1653
    %v1672 = vsub.f32 %v1640, %v1656
    %v1673 = vsub.f32 %v1641, %v1659
    %v1674 = vsub.f32 %v1642, %v1662
    %v1675 = vsub.f32 %v1643, %v1665
    %v1676 = vsub.f32 %v1644, %v1668
    %v1677 = vmul.f32 %v1669, 1.442695
    %v1678 = vpow.pop %v1677
    %v1679 = vmul.f32 %v1670, 1.442695
    %v1680 = vpow.pop %v1679
    %v1681 = vmul.f32 %v1671, 1.442695
    %v1682 = vpow.pop %v1681
    %v1683 = vmul.f32 %v1672, 1.442695
    %v1684 = vpow.pop %v1683
    %v1685 = vmul.f32 %v1673, 1.442695
    %v1686 = vpow.pop %v1685
    %v1687 = vmul.f32 %v1674, 1.442695
    %v1688 = vpow.pop %v1687
    %v1689 = vmul.f32 %v1675, 1.442695
    %v1690 = vpow.pop %v1689
    %v1691 = vmul.f32 %v1676, 1.442695
    %v1692 = vpow.pop %v1691
    %v1693 = vsel %vm1028, %v1678, 0.0
    %1694 = vadd.xlane.f32.xlu0 %v1693
    %v1695 = vpop.xlane.xlu0 %1694
    %v1696 = vsel %vm1028, %v1680, 0.0
    %1697 = vadd.xlane.f32.xlu0 %v1696
    %v1698 = vpop.xlane.xlu0 %1697
    %v1699 = vsel %vm1028, %v1682, 0.0
    %1700 = vadd.xlane.f32.xlu0 %v1699
    %v1701 = vpop.xlane.xlu0 %1700
    %v1702 = vsel %vm1028, %v1684, 0.0
    %1703 = vadd.xlane.f32.xlu0 %v1702
    %v1704 = vpop.xlane.xlu0 %1703
    %v1705 = vsel %vm1028, %v1686, 0.0
    %1706 = vadd.xlane.f32.xlu0 %v1705
    %v1707 = vpop.xlane.xlu0 %1706
    %v1708 = vsel %vm1028, %v1688, 0.0
    %1709 = vadd.xlane.f32.xlu0 %v1708
    %v1710 = vpop.xlane.xlu0 %1709
    %v1711 = vsel %vm1028, %v1690, 0.0
    %1712 = vadd.xlane.f32.xlu0 %v1711
    %v1713 = vpop.xlane.xlu0 %1712
    %v1714 = vsel %vm1028, %v1692, 0.0
    %1715 = vadd.xlane.f32.xlu0 %v1714
    %v1716 = vpop.xlane.xlu0 %1715
    %v1717 = vrcp.pop %v1695
    %v1718 = vmul.f32 %v1678, %v1717
    %v1719 = vrcp.pop %v1698
    %v1720 = vmul.f32 %v1680, %v1719
    %v1721 = vrcp.pop %v1701
    %v1722 = vmul.f32 %v1682, %v1721
    %v1723 = vrcp.pop %v1704
    %v1724 = vmul.f32 %v1684, %v1723
    %v1725 = vrcp.pop %v1707
    %v1726 = vmul.f32 %v1686, %v1725
    %v1727 = vrcp.pop %v1710
    %v1728 = vmul.f32 %v1688, %v1727
    %v1729 = vrcp.pop %v1713
    %v1730 = vmul.f32 %v1690, %v1729
    %v1731 = vrcp.pop %v1716
    %v1732 = vmul.f32 %v1692, %v1731
    %v1734 = vsel %vm1028, %v1718, 0
    %1736 = vmatprep.subr.mxu0 0.0
    %1737 = vmatpush1.msra.mxu0 %v956
    %1738 = vmatprep.subr.mxu0 0.0
    %1739 = vmatpush1.msra.mxu0 0.0
    %1740 = vmatprep.subr.mxu0 0.0
    %1741 = vmatpush1.msra.mxu0 0.0
    %1742 = vmatprep.subr.mxu0 0.0
    %1743 = vmatpush1.msra.mxu0 0.0
    %1744 = vmatprep.subr.mxu0 0.0
    %1745 = vmatpush1.msra.mxu0 0.0
    %1746 = vmatprep.subr.mxu0 0.0
    %1747 = vmatpush1.msra.mxu0 0.0
    %1748 = vmatprep.subr.mxu0 0.0
    %1749 = vmatpush1.msra.mxu0 0.0
    %1750 = vmatprep.subr.mxu0 0.0
    %1751 = vmatpush1.msra.mxu0 0.0
    %1752 = vmatprep.subr.mxu0 0.0
    %1753 = vmatpush1.msra.mxu0 0.0
    %1754 = vmatprep.subr.mxu0 0.0
    %1755 = vmatpush1.msra.mxu0 0.0
    %1756 = vmatprep.subr.mxu0 0.0
    %1757 = vmatpush1.msra.mxu0 0.0
    %1758 = vmatprep.subr.mxu0 0.0
    %1759 = vmatpush1.msra.mxu0 0.0
    %1760 = vmatprep.subr.mxu0 0.0
    %1761 = vmatpush1.msra.mxu0 0.0
    %1762 = vmatprep.subr.mxu0 0.0
    %1763 = vmatpush1.msra.mxu0 0.0
    %1764 = vmatprep.subr.mxu0 0.0
    %1765 = vmatpush1.msra.mxu0 0.0
    %1766 = vmatprep.subr.mxu0 0.0
    %1767 = vmatpush1.msra.mxu0 0.0
    %1768 = vmatprep.subr.mxu0 0.0
    %1769 = vmatpush1.msra.mxu0 0.0
    %1770 = vmatprep.subr.mxu0 0.0
    %1771 = vmatpush1.msra.mxu0 0.0
    %1772 = vmatprep.subr.mxu0 0.0
    %1773 = vmatpush1.msra.mxu0 0.0
    %1774 = vmatprep.subr.mxu0 0.0
    %1775 = vmatpush1.msra.mxu0 0.0
    %1776 = vmatprep.subr.mxu0 0.0
    %1777 = vmatpush1.msra.mxu0 0.0
    %1778 = vmatprep.subr.mxu0 0.0
    %1779 = vmatpush1.msra.mxu0 0.0
    %1780 = vmatprep.subr.mxu0 0.0
    %1781 = vmatpush1.msra.mxu0 0.0
    %1782 = vmatprep.subr.mxu0 0.0
    %1783 = vmatpush1.msra.mxu0 0.0
    %1784 = vmatprep.subr.mxu0 0.0
    %1785 = vmatpush1.msra.mxu0 0.0
    %1786 = vmatprep.subr.mxu0 0.0
    %1787 = vmatpush1.msra.mxu0 0.0
    %1788 = vmatprep.subr.mxu0 0.0
    %1789 = vmatpush1.msra.mxu0 0.0
    %1790 = vmatprep.subr.mxu0 0.0
    %1791 = vmatpush1.msra.mxu0 0.0
    %1792 = vmatprep.subr.mxu0 0.0
    %1793 = vmatpush1.msra.mxu0 0.0
    %1794 = vmatprep.subr.mxu0 0.0
    %1795 = vmatpush1.msra.mxu0 0.0
    %1796 = vmatprep.subr.mxu0 0.0
    %1797 = vmatpush1.msra.mxu0 0.0
    %1798 = vmatprep.subr.mxu0 0.0
    %1799 = vmatpush1.msra.mxu0 0.0
    %1800 = vmatprep.mubr.f32.mxu0 0.0
    %1801 = vmatmul.mubr.f32.gmra.mrb[0].mxu0 %v1734
    %v1802 = vpop.f32.mrb[0].mxu0
    %v1803 = vadd.f32 0.0, %v1802
    %v1804 = vpop.f32.mrb[0].mxu0
    %1805 = vdwg.mxu0
    %v1807 = vsel %vm1028, %v1720, 0
    %1809 = vmatprep.subr.mxu0 0.0
    %1810 = vmatpush1.msra.mxu0 %v957
    %1811 = vmatprep.subr.mxu0 0.0
    %1812 = vmatpush1.msra.mxu0 0.0
    %1813 = vmatprep.subr.mxu0 0.0
    %1814 = vmatpush1.msra.mxu0 0.0
    %1815 = vmatprep.subr.mxu0 0.0
    %1816 = vmatpush1.msra.mxu0 0.0
    %1817 = vmatprep.subr.mxu0 0.0
    %1818 = vmatpush1.msra.mxu0 0.0
    %1819 = vmatprep.subr.mxu0 0.0
    %1820 = vmatpush1.msra.mxu0 0.0
    %1821 = vmatprep.subr.mxu0 0.0
    %1822 = vmatpush1.msra.mxu0 0.0
    %1823 = vmatprep.subr.mxu0 0.0
    %1824 = vmatpush1.msra.mxu0 0.0
    %1825 = vmatprep.subr.mxu0 0.0
    %1826 = vmatpush1.msra.mxu0 0.0
    %1827 = vmatprep.subr.mxu0 0.0
    %1828 = vmatpush1.msra.mxu0 0.0
    %1829 = vmatprep.subr.mxu0 0.0
    %1830 = vmatpush1.msra.mxu0 0.0
    %1831 = vmatprep.subr.mxu0 0.0
    %1832 = vmatpush1.msra.mxu0 0.0
    %1833 = vmatprep.subr.mxu0 0.0
    %1834 = vmatpush1.msra.mxu0 0.0
    %1835 = vmatprep.subr.mxu0 0.0
    %1836 = vmatpush1.msra.mxu0 0.0
    %1837 = vmatprep.subr.mxu0 0.0
    %1838 = vmatpush1.msra.mxu0 0.0
    %1839 = vmatprep.subr.mxu0 0.0
    %1840 = vmatpush1.msra.mxu0 0.0
    %1841 = vmatprep.subr.mxu0 0.0
    %1842 = vmatpush1.msra.mxu0 0.0
    %1843 = vmatprep.subr.mxu0 0.0
    %1844 = vmatpush1.msra.mxu0 0.0
    %1845 = vmatprep.subr.mxu0 0.0
    %1846 = vmatpush1.msra.mxu0 0.0
    %1847 = vmatprep.subr.mxu0 0.0
    %1848 = vmatpush1.msra.mxu0 0.0
    %1849 = vmatprep.subr.mxu0 0.0
    %1850 = vmatpush1.msra.mxu0 0.0
    %1851 = vmatprep.subr.mxu0 0.0
    %1852 = vmatpush1.msra.mxu0 0.0
    %1853 = vmatprep.subr.mxu0 0.0
    %1854 = vmatpush1.msra.mxu0 0.0
    %1855 = vmatprep.subr.mxu0 0.0
    %1856 = vmatpush1.msra.mxu0 0.0
    %1857 = vmatprep.subr.mxu0 0.0
    %1858 = vmatpush1.msra.mxu0 0.0
    %1859 = vmatprep.subr.mxu0 0.0
    %1860 = vmatpush1.msra.mxu0 0.0
    %1861 = vmatprep.subr.mxu0 0.0
    %1862 = vmatpush1.msra.mxu0 0.0
    %1863 = vmatprep.subr.mxu0 0.0
    %1864 = vmatpush1.msra.mxu0 0.0
    %1865 = vmatprep.subr.mxu0 0.0
    %1866 = vmatpush1.msra.mxu0 0.0
    %1867 = vmatprep.subr.mxu0 0.0
    %1868 = vmatpush1.msra.mxu0 0.0
    %1869 = vmatprep.subr.mxu0 0.0
    %1870 = vmatpush1.msra.mxu0 0.0
    %1871 = vmatprep.subr.mxu0 0.0
    %1872 = vmatpush1.msra.mxu0 0.0
    %1873 = vmatprep.mubr.f32.mxu0 0.0
    %1874 = vmatmul.mubr.f32.gmra.mrb[0].mxu0 %v1807
    %v1875 = vpop.f32.mrb[0].mxu0
    %v1876 = vadd.f32 0.0, %v1875
    %v1877 = vpop.f32.mrb[0].mxu0
    %1878 = vdwg.mxu0
    %v1880 = vsel %vm1028, %v1722, 0
    %1882 = vmatprep.subr.mxu0 0.0
    %1883 = vmatpush1.msra.mxu0 %v958
    %1884 = vmatprep.subr.mxu0 0.0
    %1885 = vmatpush1.msra.mxu0 0.0
    %1886 = vmatprep.subr.mxu0 0.0
    %1887 = vmatpush1.msra.mxu0 0.0
    %1888 = vmatprep.subr.mxu0 0.0
    %1889 = vmatpush1.msra.mxu0 0.0
    %1890 = vmatprep.subr.mxu0 0.0
    %1891 = vmatpush1.msra.mxu0 0.0
    %1892 = vmatprep.subr.mxu0 0.0
    %1893 = vmatpush1.msra.mxu0 0.0
    %1894 = vmatprep.subr.mxu0 0.0
    %1895 = vmatpush1.msra.mxu0 0.0
    %1896 = vmatprep.subr.mxu0 0.0
    %1897 = vmatpush1.msra.mxu0 0.0
    %1898 = vmatprep.subr.mxu0 0.0
    %1899 = vmatpush1.msra.mxu0 0.0
    %1900 = vmatprep.subr.mxu0 0.0
    %1901 = vmatpush1.msra.mxu0 0.0
    %1902 = vmatprep.subr.mxu0 0.0
    %1903 = vmatpush1.msra.mxu0 0.0
    %1904 = vmatprep.subr.mxu0 0.0
    %1905 = vmatpush1.msra.mxu0 0.0
    %1906 = vmatprep.subr.mxu0 0.0
    %1907 = vmatpush1.msra.mxu0 0.0
    %1908 = vmatprep.subr.mxu0 0.0
    %1909 = vmatpush1.msra.mxu0 0.0
    %1910 = vmatprep.subr.mxu0 0.0
    %1911 = vmatpush1.msra.mxu0 0.0
    %1912 = vmatprep.subr.mxu0 0.0
    %1913 = vmatpush1.msra.mxu0 0.0
    %1914 = vmatprep.subr.mxu0 0.0
    %1915 = vmatpush1.msra.mxu0 0.0
    %1916 = vmatprep.subr.mxu0 0.0
    %1917 = vmatpush1.msra.mxu0 0.0
    %1918 = vmatprep.subr.mxu0 0.0
    %1919 = vmatpush1.msra.mxu0 0.0
    %1920 = vmatprep.subr.mxu0 0.0
    %1921 = vmatpush1.msra.mxu0 0.0
    %1922 = vmatprep.subr.mxu0 0.0
    %1923 = vmatpush1.msra.mxu0 0.0
    %1924 = vmatprep.subr.mxu0 0.0
    %1925 = vmatpush1.msra.mxu0 0.0
    %1926 = vmatprep.subr.mxu0 0.0
    %1927 = vmatpush1.msra.mxu0 0.0
    %1928 = vmatprep.subr.mxu0 0.0
    %1929 = vmatpush1.msra.mxu0 0.0
    %1930 = vmatprep.subr.mxu0 0.0
    %1931 = vmatpush1.msra.mxu0 0.0
    %1932 = vmatprep.subr.mxu0 0.0
    %1933 = vmatpush1.msra.mxu0 0.0
    %1934 = vmatprep.subr.mxu0 0.0
    %1935 = vmatpush1.msra.mxu0 0.0
    %1936 = vmatprep.subr.mxu0 0.0
    %1937 = vmatpush1.msra.mxu0 0.0
    %1938 = vmatprep.subr.mxu0 0.0
    %1939 = vmatpush1.msra.mxu0 0.0
    %1940 = vmatprep.subr.mxu0 0.0
    %1941 = vmatpush1.msra.mxu0 0.0
    %1942 = vmatprep.subr.mxu0 0.0
    %1943 = vmatpush1.msra.mxu0 0.0
    %1944 = vmatprep.subr.mxu0 0.0
    %1945 = vmatpush1.msra.mxu0 0.0
    %1946 = vmatprep.mubr.f32.mxu0 0.0
    %1947 = vmatmul.mubr.f32.gmra.mrb[0].mxu0 %v1880
    %v1948 = vpop.f32.mrb[0].mxu0
    %v1949 = vadd.f32 0.0, %v1948
    %v1950 = vpop.f32.mrb[0].mxu0
    %1951 = vdwg.mxu0
    %v1953 = vsel %vm1028, %v1724, 0
    %1955 = vmatprep.subr.mxu0 0.0
    %1956 = vmatpush1.msra.mxu0 %v959
    %1957 = vmatprep.subr.mxu0 0.0
    %1958 = vmatpush1.msra.mxu0 0.0
    %1959 = vmatprep.subr.mxu0 0.0
    %1960 = vmatpush1.msra.mxu0 0.0
    %1961 = vmatprep.subr.mxu0 0.0
    %1962 = vmatpush1.msra.mxu0 0.0
    %1963 = vmatprep.subr.mxu0 0.0
    %1964 = vmatpush1.msra.mxu0 0.0
    %1965 = vmatprep.subr.mxu0 0.0
    %1966 = vmatpush1.msra.mxu0 0.0
    %1967 = vmatprep.subr.mxu0 0.0
    %1968 = vmatpush1.msra.mxu0 0.0
    %1969 = vmatprep.subr.mxu0 0.0
    %1970 = vmatpush1.msra.mxu0 0.0
    %1971 = vmatprep.subr.mxu0 0.0
    %1972 = vmatpush1.msra.mxu0 0.0
    %1973 = vmatprep.subr.mxu0 0.0
    %1974 = vmatpush1.msra.mxu0 0.0
    %1975 = vmatprep.subr.mxu0 0.0
    %1976 = vmatpush1.msra.mxu0 0.0
    %1977 = vmatprep.subr.mxu0 0.0
    %1978 = vmatpush1.msra.mxu0 0.0
    %1979 = vmatprep.subr.mxu0 0.0
    %1980 = vmatpush1.msra.mxu0 0.0
    %1981 = vmatprep.subr.mxu0 0.0
    %1982 = vmatpush1.msra.mxu0 0.0
    %1983 = vmatprep.subr.mxu0 0.0
    %1984 = vmatpush1.msra.mxu0 0.0
    %1985 = vmatprep.subr.mxu0 0.0
    %1986 = vmatpush1.msra.mxu0 0.0
    %1987 = vmatprep.subr.mxu0 0.0
    %1988 = vmatpush1.msra.mxu0 0.0
    %1989 = vmatprep.subr.mxu0 0.0
    %1990 = vmatpush1.msra.mxu0 0.0
    %1991 = vmatprep.subr.mxu0 0.0
    %1992 = vmatpush1.msra.mxu0 0.0
    %1993 = vmatprep.subr.mxu0 0.0
    %1994 = vmatpush1.msra.mxu0 0.0
    %1995 = vmatprep.subr.mxu0 0.0
    %1996 = vmatpush1.msra.mxu0 0.0
    %1997 = vmatprep.subr.mxu0 0.0
    %1998 = vmatpush1.msra.mxu0 0.0
    %1999 = vmatprep.subr.mxu0 0.0
    %2000 = vmatpush1.msra.mxu0 0.0
    %2001 = vmatprep.subr.mxu0 0.0
    %2002 = vmatpush1.msra.mxu0 0.0
    %2003 = vmatprep.subr.mxu0 0.0
    %2004 = vmatpush1.msra.mxu0 0.0
    %2005 = vmatprep.subr.mxu0 0.0
    %2006 = vmatpush1.msra.mxu0 0.0
    %2007 = vmatprep.subr.mxu0 0.0
    %2008 = vmatpush1.msra.mxu0 0.0
    %2009 = vmatprep.subr.mxu0 0.0
    %2010 = vmatpush1.msra.mxu0 0.0
    %2011 = vmatprep.subr.mxu0 0.0
    %2012 = vmatpush1.msra.mxu0 0.0
    %2013 = vmatprep.subr.mxu0 0.0
    %2014 = vmatpush1.msra.mxu0 0.0
    %2015 = vmatprep.subr.mxu0 0.0
    %2016 = vmatpush1.msra.mxu0 0.0
    %2017 = vmatprep.subr.mxu0 0.0
    %2018 = vmatpush1.msra.mxu0 0.0
    %2019 = vmatprep.mubr.f32.mxu0 0.0
    %2020 = vmatmul.mubr.f32.gmra.mrb[0].mxu0 %v1953
    %v2021 = vpop.f32.mrb[0].mxu0
    %v2022 = vadd.f32 0.0, %v2021
    %v2023 = vpop.f32.mrb[0].mxu0
    %2024 = vdwg.mxu0
    %v2026 = vsel %vm1028, %v1726, 0
    %2028 = vmatprep.subr.mxu0 0.0
    %2029 = vmatpush1.msra.mxu0 %v1024
    %2030 = vmatprep.subr.mxu0 0.0
    %2031 = vmatpush1.msra.mxu0 0.0
    %2032 = vmatprep.subr.mxu0 0.0
    %2033 = vmatpush1.msra.mxu0 0.0
    %2034 = vmatprep.subr.mxu0 0.0
    %2035 = vmatpush1.msra.mxu0 0.0
    %2036 = vmatprep.subr.mxu0 0.0
    %2037 = vmatpush1.msra.mxu0 0.0
    %2038 = vmatprep.subr.mxu0 0.0
    %2039 = vmatpush1.msra.mxu0 0.0
    %2040 = vmatprep.subr.mxu0 0.0
    %2041 = vmatpush1.msra.mxu0 0.0
    %2042 = vmatprep.subr.mxu0 0.0
    %2043 = vmatpush1.msra.mxu0 0.0
    %2044 = vmatprep.subr.mxu0 0.0
    %2045 = vmatpush1.msra.mxu0 0.0
    %2046 = vmatprep.subr.mxu0 0.0
    %2047 = vmatpush1.msra.mxu0 0.0
    %2048 = vmatprep.subr.mxu0 0.0
    %2049 = vmatpush1.msra.mxu0 0.0
    %2050 = vmatprep.subr.mxu0 0.0
    %2051 = vmatpush1.msra.mxu0 0.0
    %2052 = vmatprep.subr.mxu0 0.0
    %2053 = vmatpush1.msra.mxu0 0.0
    %2054 = vmatprep.subr.mxu0 0.0
    %2055 = vmatpush1.msra.mxu0 0.0
    %2056 = vmatprep.subr.mxu0 0.0
    %2057 = vmatpush1.msra.mxu0 0.0
    %2058 = vmatprep.subr.mxu0 0.0
    %2059 = vmatpush1.msra.mxu0 0.0
    %2060 = vmatprep.subr.mxu0 0.0
    %2061 = vmatpush1.msra.mxu0 0.0
    %2062 = vmatprep.subr.mxu0 0.0
    %2063 = vmatpush1.msra.mxu0 0.0
    %2064 = vmatprep.subr.mxu0 0.0
    %2065 = vmatpush1.msra.mxu0 0.0
    %2066 = vmatprep.subr.mxu0 0.0
    %2067 = vmatpush1.msra.mxu0 0.0
    %2068 = vmatprep.subr.mxu0 0.0
    %2069 = vmatpush1.msra.mxu0 0.0
    %2070 = vmatprep.subr.mxu0 0.0
    %2071 = vmatpush1.msra.mxu0 0.0
    %2072 = vmatprep.subr.mxu0 0.0
    %2073 = vmatpush1.msra.mxu0 0.0
    %2074 = vmatprep.subr.mxu0 0.0
    %2075 = vmatpush1.msra.mxu0 0.0
    %2076 = vmatprep.subr.mxu0 0.0
    %2077 = vmatpush1.msra.mxu0 0.0
    %2078 = vmatprep.subr.mxu0 0.0
    %2079 = vmatpush1.msra.mxu0 0.0
    %2080 = vmatprep.subr.mxu0 0.0
    %2081 = vmatpush1.msra.mxu0 0.0
    %2082 = vmatprep.subr.mxu0 0.0
    %2083 = vmatpush1.msra.mxu0 0.0
    %2084 = vmatprep.subr.mxu0 0.0
    %2085 = vmatpush1.msra.mxu0 0.0
    %2086 = vmatprep.subr.mxu0 0.0
    %2087 = vmatpush1.msra.mxu0 0.0
    %2088 = vmatprep.subr.mxu0 0.0
    %2089 = vmatpush1.msra.mxu0 0.0
    %2090 = vmatprep.subr.mxu0 0.0
    %2091 = vmatpush1.msra.mxu0 0.0
    %2092 = vmatprep.mubr.f32.mxu0 0.0
    %2093 = vmatmul.mubr.f32.gmra.mrb[0].mxu0 %v2026
    %v2094 = vpop.f32.mrb[0].mxu0
    %v2095 = vadd.f32 0.0, %v2094
    %v2096 = vpop.f32.mrb[0].mxu0
    %2097 = vdwg.mxu0
    %v2099 = vsel %vm1028, %v1728, 0
    %2101 = vmatprep.subr.mxu0 0.0
    %2102 = vmatpush1.msra.mxu0 %v1025
    %2103 = vmatprep.subr.mxu0 0.0
    %2104 = vmatpush1.msra.mxu0 0.0
    %2105 = vmatprep.subr.mxu0 0.0
    %2106 = vmatpush1.msra.mxu0 0.0
    %2107 = vmatprep.subr.mxu0 0.0
    %2108 = vmatpush1.msra.mxu0 0.0
    %2109 = vmatprep.subr.mxu0 0.0
    %2110 = vmatpush1.msra.mxu0 0.0
    %2111 = vmatprep.subr.mxu0 0.0
    %2112 = vmatpush1.msra.mxu0 0.0
    %2113 = vmatprep.subr.mxu0 0.0
    %2114 = vmatpush1.msra.mxu0 0.0
    %2115 = vmatprep.subr.mxu0 0.0
    %2116 = vmatpush1.msra.mxu0 0.0
    %2117 = vmatprep.subr.mxu0 0.0
    %2118 = vmatpush1.msra.mxu0 0.0
    %2119 = vmatprep.subr.mxu0 0.0
    %2120 = vmatpush1.msra.mxu0 0.0
    %2121 = vmatprep.subr.mxu0 0.0
    %2122 = vmatpush1.msra.mxu0 0.0
    %2123 = vmatprep.subr.mxu0 0.0
    %2124 = vmatpush1.msra.mxu0 0.0
    %2125 = vmatprep.subr.mxu0 0.0
    %2126 = vmatpush1.msra.mxu0 0.0
    %2127 = vmatprep.subr.mxu0 0.0
    %2128 = vmatpush1.msra.mxu0 0.0
    %2129 = vmatprep.subr.mxu0 0.0
    %2130 = vmatpush1.msra.mxu0 0.0
    %2131 = vmatprep.subr.mxu0 0.0
    %2132 = vmatpush1.msra.mxu0 0.0
    %2133 = vmatprep.subr.mxu0 0.0
    %2134 = vmatpush1.msra.mxu0 0.0
    %2135 = vmatprep.subr.mxu0 0.0
    %2136 = vmatpush1.msra.mxu0 0.0
    %2137 = vmatprep.subr.mxu0 0.0
    %2138 = vmatpush1.msra.mxu0 0.0
    %2139 = vmatprep.subr.mxu0 0.0
    %2140 = vmatpush1.msra.mxu0 0.0
    %2141 = vmatprep.subr.mxu0 0.0
    %2142 = vmatpush1.msra.mxu0 0.0
    %2143 = vmatprep.subr.mxu0 0.0
    %2144 = vmatpush1.msra.mxu0 0.0
    %2145 = vmatprep.subr.mxu0 0.0
    %2146 = vmatpush1.msra.mxu0 0.0
    %2147 = vmatprep.subr.mxu0 0.0
    %2148 = vmatpush1.msra.mxu0 0.0
    %2149 = vmatprep.subr.mxu0 0.0
    %2150 = vmatpush1.msra.mxu0 0.0
    %2151 = vmatprep.subr.mxu0 0.0
    %2152 = vmatpush1.msra.mxu0 0.0
    %2153 = vmatprep.subr.mxu0 0.0
    %2154 = vmatpush1.msra.mxu0 0.0
    %2155 = vmatprep.subr.mxu0 0.0
    %2156 = vmatpush1.msra.mxu0 0.0
    %2157 = vmatprep.subr.mxu0 0.0
    %2158 = vmatpush1.msra.mxu0 0.0
    %2159 = vmatprep.subr.mxu0 0.0
    %2160 = vmatpush1.msra.mxu0 0.0
    %2161 = vmatprep.subr.mxu0 0.0
    %2162 = vmatpush1.msra.mxu0 0.0
    %2163 = vmatprep.subr.mxu0 0.0
    %2164 = vmatpush1.msra.mxu0 0.0
    %2165 = vmatprep.mubr.f32.mxu0 0.0
    %2166 = vmatmul.mubr.f32.gmra.mrb[0].mxu0 %v2099
    %v2167 = vpop.f32.mrb[0].mxu0
    %v2168 = vadd.f32 0.0, %v2167
    %v2169 = vpop.f32.mrb[0].mxu0
    %2170 = vdwg.mxu0
    %v2172 = vsel %vm1028, %v1730, 0
    %2174 = vmatprep.subr.mxu0 0.0
    %2175 = vmatpush1.msra.mxu0 %v1026
    %2176 = vmatprep.subr.mxu0 0.0
    %2177 = vmatpush1.msra.mxu0 0.0
    %2178 = vmatprep.subr.mxu0 0.0
    %2179 = vmatpush1.msra.mxu0 0.0
    %2180 = vmatprep.subr.mxu0 0.0
    %2181 = vmatpush1.msra.mxu0 0.0
    %2182 = vmatprep.subr.mxu0 0.0
    %2183 = vmatpush1.msra.mxu0 0.0
    %2184 = vmatprep.subr.mxu0 0.0
    %2185 = vmatpush1.msra.mxu0 0.0
    %2186 = vmatprep.subr.mxu0 0.0
    %2187 = vmatpush1.msra.mxu0 0.0
    %2188 = vmatprep.subr.mxu0 0.0
    %2189 = vmatpush1.msra.mxu0 0.0
    %2190 = vmatprep.subr.mxu0 0.0
    %2191 = vmatpush1.msra.mxu0 0.0
    %2192 = vmatprep.subr.mxu0 0.0
    %2193 = vmatpush1.msra.mxu0 0.0
    %2194 = vmatprep.subr.mxu0 0.0
    %2195 = vmatpush1.msra.mxu0 0.0
    %2196 = vmatprep.subr.mxu0 0.0
    %2197 = vmatpush1.msra.mxu0 0.0
    %2198 = vmatprep.subr.mxu0 0.0
    %2199 = vmatpush1.msra.mxu0 0.0
    %2200 = vmatprep.subr.mxu0 0.0
    %2201 = vmatpush1.msra.mxu0 0.0
    %2202 = vmatprep.subr.mxu0 0.0
    %2203 = vmatpush1.msra.mxu0 0.0
    %2204 = vmatprep.subr.mxu0 0.0
    %2205 = vmatpush1.msra.mxu0 0.0
    %2206 = vmatprep.subr.mxu0 0.0
    %2207 = vmatpush1.msra.mxu0 0.0
    %2208 = vmatprep.subr.mxu0 0.0
    %2209 = vmatpush1.msra.mxu0 0.0
    %2210 = vmatprep.subr.mxu0 0.0
    %2211 = vmatpush1.msra.mxu0 0.0
    %2212 = vmatprep.subr.mxu0 0.0
    %2213 = vmatpush1.msra.mxu0 0.0
    %2214 = vmatprep.subr.mxu0 0.0
    %2215 = vmatpush1.msra.mxu0 0.0
    %2216 = vmatprep.subr.mxu0 0.0
    %2217 = vmatpush1.msra.mxu0 0.0
    %2218 = vmatprep.subr.mxu0 0.0
    %2219 = vmatpush1.msra.mxu0 0.0
    %2220 = vmatprep.subr.mxu0 0.0
    %2221 = vmatpush1.msra.mxu0 0.0
    %2222 = vmatprep.subr.mxu0 0.0
    %2223 = vmatpush1.msra.mxu0 0.0
    %2224 = vmatprep.subr.mxu0 0.0
    %2225 = vmatpush1.msra.mxu0 0.0
    %2226 = vmatprep.subr.mxu0 0.0
    %2227 = vmatpush1.msra.mxu0 0.0
    %2228 = vmatprep.subr.mxu0 0.0
    %2229 = vmatpush1.msra.mxu0 0.0
    %2230 = vmatprep.subr.mxu0 0.0
    %2231 = vmatpush1.msra.mxu0 0.0
    %2232 = vmatprep.subr.mxu0 0.0
    %2233 = vmatpush1.msra.mxu0 0.0
    %2234 = vmatprep.subr.mxu0 0.0
    %2235 = vmatpush1.msra.mxu0 0.0
    %2236 = vmatprep.subr.mxu0 0.0
    %2237 = vmatpush1.msra.mxu0 0.0
    %2238 = vmatprep.mubr.f32.mxu0 0.0
    %2239 = vmatmul.mubr.f32.gmra.mrb[0].mxu0 %v2172
    %v2240 = vpop.f32.mrb[0].mxu0
    %v2241 = vadd.f32 0.0, %v2240
    %v2242 = vpop.f32.mrb[0].mxu0
    %2243 = vdwg.mxu0
    %v2245 = vsel %vm1028, %v1732, 0
    %2247 = vmatprep.subr.mxu0 0.0
    %2248 = vmatpush1.msra.mxu0 %v1027
    %2249 = vmatprep.subr.mxu0 0.0
    %2250 = vmatpush1.msra.mxu0 0.0
    %2251 = vmatprep.subr.mxu0 0.0
    %2252 = vmatpush1.msra.mxu0 0.0
    %2253 = vmatprep.subr.mxu0 0.0
    %2254 = vmatpush1.msra.mxu0 0.0
    %2255 = vmatprep.subr.mxu0 0.0
    %2256 = vmatpush1.msra.mxu0 0.0
    %2257 = vmatprep.subr.mxu0 0.0
    %2258 = vmatpush1.msra.mxu0 0.0
    %2259 = vmatprep.subr.mxu0 0.0
    %2260 = vmatpush1.msra.mxu0 0.0
    %2261 = vmatprep.subr.mxu0 0.0
    %2262 = vmatpush1.msra.mxu0 0.0
    %2263 = vmatprep.subr.mxu0 0.0
    %2264 = vmatpush1.msra.mxu0 0.0
    %2265 = vmatprep.subr.mxu0 0.0
    %2266 = vmatpush1.msra.mxu0 0.0
    %2267 = vmatprep.subr.mxu0 0.0
    %2268 = vmatpush1.msra.mxu0 0.0
    %2269 = vmatprep.subr.mxu0 0.0
    %2270 = vmatpush1.msra.mxu0 0.0
    %2271 = vmatprep.subr.mxu0 0.0
    %2272 = vmatpush1.msra.mxu0 0.0
    %2273 = vmatprep.subr.mxu0 0.0
    %2274 = vmatpush1.msra.mxu0 0.0
    %2275 = vmatprep.subr.mxu0 0.0
    %2276 = vmatpush1.msra.mxu0 0.0
    %2277 = vmatprep.subr.mxu0 0.0
    %2278 = vmatpush1.msra.mxu0 0.0
    %2279 = vmatprep.subr.mxu0 0.0
    %2280 = vmatpush1.msra.mxu0 0.0
    %2281 = vmatprep.subr.mxu0 0.0
    %2282 = vmatpush1.msra.mxu0 0.0
    %2283 = vmatprep.subr.mxu0 0.0
    %2284 = vmatpush1.msra.mxu0 0.0
    %2285 = vmatprep.subr.mxu0 0.0
    %2286 = vmatpush1.msra.mxu0 0.0
    %2287 = vmatprep.subr.mxu0 0.0
    %2288 = vmatpush1.msra.mxu0 0.0
    %2289 = vmatprep.subr.mxu0 0.0
    %2290 = vmatpush1.msra.mxu0 0.0
    %2291 = vmatprep.subr.mxu0 0.0
    %2292 = vmatpush1.msra.mxu0 0.0
    %2293 = vmatprep.subr.mxu0 0.0
    %2294 = vmatpush1.msra.mxu0 0.0
    %2295 = vmatprep.subr.mxu0 0.0
    %2296 = vmatpush1.msra.mxu0 0.0
    %2297 = vmatprep.subr.mxu0 0.0
    %2298 = vmatpush1.msra.mxu0 0.0
    %2299 = vmatprep.subr.mxu0 0.0
    %2300 = vmatpush1.msra.mxu0 0.0
    %2301 = vmatprep.subr.mxu0 0.0
    %2302 = vmatpush1.msra.mxu0 0.0
    %2303 = vmatprep.subr.mxu0 0.0
    %2304 = vmatpush1.msra.mxu0 0.0
    %2305 = vmatprep.subr.mxu0 0.0
    %2306 = vmatpush1.msra.mxu0 0.0
    %2307 = vmatprep.subr.mxu0 0.0
    %2308 = vmatpush1.msra.mxu0 0.0
    %2309 = vmatprep.subr.mxu0 0.0
    %2310 = vmatpush1.msra.mxu0 0.0
    %2311 = vmatprep.mubr.f32.mxu0 0.0
    %2312 = vmatmul.mubr.f32.gmra.mrb[0].mxu0 %v2245
    %v2313 = vpop.f32.mrb[0].mxu0
    %v2314 = vadd.f32 0.0, %v2313
    %v2315 = vpop.f32.mrb[0].mxu0
    %2316 = vdwg.mxu0
    %v2317 = vcombine.low %v1803, %v1949
    %v2318 = vcombine.high %v1803, %v1949
    %v2320 = vunpack.c.l.s4 1983009808
    %v2321 = vunpack.c.0.s8 %v2320
    %v2322 = vlaneseq
    %v2323 = vshrl.u32 %v2322, 7
    %v2324 = vsub.s32 %v2321, %v2323
    %v2325 = vrot.slane %v2317, %v2324
    %v2327 = vunpack.c.l.s4 1983009808
    %v2328 = vunpack.c.0.s8 %v2327
    %v2329 = vlaneseq
    %v2330 = vshrl.u32 %v2329, 7
    %v2331 = vsub.s32 %v2328, %v2330
    %v2332 = vrot.slane %v2318, %v2331
    %v2333 = vcombine.low %v1876, %v2022
    %v2334 = vcombine.high %v1876, %v2022
    %v2336 = vunpack.c.l.s4 1983009808
    %v2337 = vunpack.c.0.s8 %v2336
    %v2338 = vlaneseq
    %v2339 = vshrl.u32 %v2338, 7
    %v2340 = vsub.s32 %v2337, %v2339
    %v2341 = vrot.slane %v2333, %v2340
    %v2343 = vunpack.c.l.s4 1983009808
    %v2344 = vunpack.c.0.s8 %v2343
    %v2345 = vlaneseq
    %v2346 = vshrl.u32 %v2345, 7
    %v2347 = vsub.s32 %v2344, %v2346
    %v2348 = vrot.slane %v2334, %v2347
    %v2349 = vcombine.low %v2325, %v2341
    %v2350 = vcombine.high %v2325, %v2341
    %v2352 = vunpack.c.l.s4 1934713408
    %v2353 = vunpack.c.0.s8 %v2352
    %v2354 = vlaneseq
    %v2355 = vshrl.u32 %v2354, 7
    %v2356 = vsub.s32 %v2353, %v2355
    %v2357 = vrot.slane %v2349, %v2356
    %v2359 = vunpack.c.l.s4 1934713408
    %v2360 = vunpack.c.0.s8 %v2359
    %v2361 = vlaneseq
    %v2362 = vshrl.u32 %v2361, 7
    %v2363 = vsub.s32 %v2360, %v2362
    %v2364 = vrot.slane %v2350, %v2363
    %v2365 = vcombine.low %v2332, %v2348
    %v2366 = vcombine.high %v2332, %v2348
    %v2368 = vunpack.c.l.s4 1934713408
    %v2369 = vunpack.c.0.s8 %v2368
    %v2370 = vlaneseq
    %v2371 = vshrl.u32 %v2370, 7
    %v2372 = vsub.s32 %v2369, %v2371
    %v2373 = vrot.slane %v2365, %v2372
    %v2375 = vunpack.c.l.s4 1934713408
    %v2376 = vunpack.c.0.s8 %v2375
    %v2377 = vlaneseq
    %v2378 = vshrl.u32 %v2377, 7
    %v2379 = vsub.s32 %v2376, %v2378
    %v2380 = vrot.slane %v2366, %v2379
    %v2381 = vcombine.high %v2357, 0.0
    %v2382 = vcombine.high %v2364, 0.0
    %v2383 = vcombine.high %v2373, 0.0
    %v2384 = vcombine.high %v2380, 0.0
    %v2385 = vcombine.low %v2095, %v2241
    %v2386 = vcombine.high %v2095, %v2241
    %v2388 = vunpack.c.l.s4 1983009808
    %v2389 = vunpack.c.0.s8 %v2388
    %v2390 = vlaneseq
    %v2391 = vshrl.u32 %v2390, 7
    %v2392 = vsub.s32 %v2389, %v2391
    %v2393 = vrot.slane %v2385, %v2392
    %v2395 = vunpack.c.l.s4 1983009808
    %v2396 = vunpack.c.0.s8 %v2395
    %v2397 = vlaneseq
    %v2398 = vshrl.u32 %v2397, 7
    %v2399 = vsub.s32 %v2396, %v2398
    %v2400 = vrot.slane %v2386, %v2399
    %v2401 = vcombine.low %v2168, %v2314
    %v2402 = vcombine.high %v2168, %v2314
    %v2404 = vunpack.c.l.s4 1983009808
    %v2405 = vunpack.c.0.s8 %v2404
    %v2406 = vlaneseq
    %v2407 = vshrl.u32 %v2406, 7
    %v2408 = vsub.s32 %v2405, %v2407
    %v2409 = vrot.slane %v2401, %v2408
    %v2411 = vunpack.c.l.s4 1983009808
    %v2412 = vunpack.c.0.s8 %v2411
    %v2413 = vlaneseq
    %v2414 = vshrl.u32 %v2413, 7
    %v2415 = vsub.s32 %v2412, %v2414
    %v2416 = vrot.slane %v2402, %v2415
    %v2417 = vcombine.low %v2393, %v2409
    %v2418 = vcombine.high %v2393, %v2409
    %v2420 = vunpack.c.l.s4 1934713408
    %v2421 = vunpack.c.0.s8 %v2420
    %v2422 = vlaneseq
    %v2423 = vshrl.u32 %v2422, 7
    %v2424 = vsub.s32 %v2421, %v2423
    %v2425 = vrot.slane %v2417, %v2424
    %v2427 = vunpack.c.l.s4 1934713408
    %v2428 = vunpack.c.0.s8 %v2427
    %v2429 = vlaneseq
    %v2430 = vshrl.u32 %v2429, 7
    %v2431 = vsub.s32 %v2428, %v2430
    %v2432 = vrot.slane %v2418, %v2431
    %v2433 = vcombine.low %v2400, %v2416
    %v2434 = vcombine.high %v2400, %v2416
    %v2436 = vunpack.c.l.s4 1934713408
    %v2437 = vunpack.c.0.s8 %v2436
    %v2438 = vlaneseq
    %v2439 = vshrl.u32 %v2438, 7
    %v2440 = vsub.s32 %v2437, %v2439
    %v2441 = vrot.slane %v2433, %v2440
    %v2443 = vunpack.c.l.s4 1934713408
    %v2444 = vunpack.c.0.s8 %v2443
    %v2445 = vlaneseq
    %v2446 = vshrl.u32 %v2445, 7
    %v2447 = vsub.s32 %v2444, %v2446
    %v2448 = vrot.slane %v2434, %v2447
    %v2449 = vcombine.high %v2425, 0.0
    %v2450 = vcombine.high %v2432, 0.0
    %v2451 = vcombine.high %v2441, 0.0
    %v2452 = vcombine.high %v2448, 0.0
    %v2453 = vcombine.low %v2357, %v2364
    %v2455 = vunpack.c.l.s4 1983009808
    %v2456 = vunpack.c.0.s8 %v2455
    %v2457 = vlaneseq
    %v2458 = vshrl.u32 %v2457, 7
    %v2459 = vsub.s32 %v2456, %v2458
    %v2460 = vrot.slane %v2453, %v2459
    %v2461 = vcombine.low %v2381, %v2382
    %v2463 = vunpack.c.l.s4 1983009808
    %v2464 = vunpack.c.0.s8 %v2463
    %v2465 = vlaneseq
    %v2466 = vshrl.u32 %v2465, 7
    %v2467 = vsub.s32 %v2464, %v2466
    %v2468 = vrot.slane %v2461, %v2467
    %v2469 = vcombine.low %v2373, %v2380
    %v2471 = vunpack.c.l.s4 1983009808
    %v2472 = vunpack.c.0.s8 %v2471
    %v2473 = vlaneseq
    %v2474 = vshrl.u32 %v2473, 7
    %v2475 = vsub.s32 %v2472, %v2474
    %v2476 = vrot.slane %v2469, %v2475
    %v2477 = vcombine.low %v2383, %v2384
    %v2479 = vunpack.c.l.s4 1983009808
    %v2480 = vunpack.c.0.s8 %v2479
    %v2481 = vlaneseq
    %v2482 = vshrl.u32 %v2481, 7
    %v2483 = vsub.s32 %v2480, %v2482
    %v2484 = vrot.slane %v2477, %v2483
    %v2485 = vcombine.low %v2460, %v2468
    %v2486 = vcombine.high %v2460, %v2468
    %v2488 = vunpack.c.l.s4 1934713408
    %v2489 = vunpack.c.0.s8 %v2488
    %v2490 = vlaneseq
    %v2491 = vshrl.u32 %v2490, 7
    %v2492 = vsub.s32 %v2489, %v2491
    %v2493 = vrot.slane %v2485, %v2492
    %v2495 = vunpack.c.l.s4 1934713408
    %v2496 = vunpack.c.0.s8 %v2495
    %v2497 = vlaneseq
    %v2498 = vshrl.u32 %v2497, 7
    %v2499 = vsub.s32 %v2496, %v2498
    %v2500 = vrot.slane %v2486, %v2499
    %v2501 = vcombine.low %v2476, %v2484
    %v2502 = vcombine.high %v2476, %v2484
    %v2504 = vunpack.c.l.s4 1934713408
    %v2505 = vunpack.c.0.s8 %v2504
    %v2506 = vlaneseq
    %v2507 = vshrl.u32 %v2506, 7
    %v2508 = vsub.s32 %v2505, %v2507
    %v2509 = vrot.slane %v2501, %v2508
    %v2511 = vunpack.c.l.s4 1934713408
    %v2512 = vunpack.c.0.s8 %v2511
    %v2513 = vlaneseq
    %v2514 = vshrl.u32 %v2513, 7
    %v2515 = vsub.s32 %v2512, %v2514
    %v2516 = vrot.slane %v2502, %v2515
    %v2517 = vcombine.low %v2493, %v2509
    %v2518 = vcombine.high %v2493, %v2509
    %v2519 = vcombine.low %v2500, %v2516
    %v2520 = vcombine.high %v2500, %v2516
    %v2521 = vcombine.low %v2425, %v2432
    %v2523 = vunpack.c.l.s4 1983009808
    %v2524 = vunpack.c.0.s8 %v2523
    %v2525 = vlaneseq
    %v2526 = vshrl.u32 %v2525, 7
    %v2527 = vsub.s32 %v2524, %v2526
    %v2528 = vrot.slane %v2521, %v2527
    %v2529 = vcombine.low %v2449, %v2450
    %v2531 = vunpack.c.l.s4 1983009808
    %v2532 = vunpack.c.0.s8 %v2531
    %v2533 = vlaneseq
    %v2534 = vshrl.u32 %v2533, 7
    %v2535 = vsub.s32 %v2532, %v2534
    %v2536 = vrot.slane %v2529, %v2535
    %v2537 = vcombine.low %v2441, %v2448
    %v2539 = vunpack.c.l.s4 1983009808
    %v2540 = vunpack.c.0.s8 %v2539
    %v2541 = vlaneseq
    %v2542 = vshrl.u32 %v2541, 7
    %v2543 = vsub.s32 %v2540, %v2542
    %v2544 = vrot.slane %v2537, %v2543
    %v2545 = vcombine.low %v2451, %v2452
    %v2547 = vunpack.c.l.s4 1983009808
    %v2548 = vunpack.c.0.s8 %v2547
    %v2549 = vlaneseq
    %v2550 = vshrl.u32 %v2549, 7
    %v2551 = vsub.s32 %v2548, %v2550
    %v2552 = vrot.slane %v2545, %v2551
    %v2553 = vcombine.low %v2528, %v2536
    %v2554 = vcombine.high %v2528, %v2536
    %v2556 = vunpack.c.l.s4 1934713408
    %v2557 = vunpack.c.0.s8 %v2556
    %v2558 = vlaneseq
    %v2559 = vshrl.u32 %v2558, 7
    %v2560 = vsub.s32 %v2557, %v2559
    %v2561 = vrot.slane %v2553, %v2560
    %v2563 = vunpack.c.l.s4 1934713408
    %v2564 = vunpack.c.0.s8 %v2563
    %v2565 = vlaneseq
    %v2566 = vshrl.u32 %v2565, 7
    %v2567 = vsub.s32 %v2564, %v2566
    %v2568 = vrot.slane %v2554, %v2567
    %v2569 = vcombine.low %v2544, %v2552
    %v2570 = vcombine.high %v2544, %v2552
    %v2572 = vunpack.c.l.s4 1934713408
    %v2573 = vunpack.c.0.s8 %v2572
    %v2574 = vlaneseq
    %v2575 = vshrl.u32 %v2574, 7
    %v2576 = vsub.s32 %v2573, %v2575
    %v2577 = vrot.slane %v2569, %v2576
    %v2579 = vunpack.c.l.s4 1934713408
    %v2580 = vunpack.c.0.s8 %v2579
    %v2581 = vlaneseq
    %v2582 = vshrl.u32 %v2581, 7
    %v2583 = vsub.s32 %v2580, %v2582
    %v2584 = vrot.slane %v2570, %v2583
    %v2585 = vcombine.low %v2561, %v2577
    %v2586 = vcombine.high %v2561, %v2577
    %v2587 = vcombine.low %v2568, %v2584
    %v2588 = vcombine.high %v2568, %v2584
    %2591 = vrot.lane.b32.xlu0 %v2518, 8
    %v2592 = vpop.permute.xlu0 %2591
    %2593 = vrot.lane.b32.xlu0 %v2586, 8
    %v2594 = vpop.permute.xlu0 %2593
    %2599 = vrot.lane.b32.xlu0 %v2519, 16
    %v2600 = vpop.permute.xlu0 %2599
    %2601 = vrot.lane.b32.xlu0 %v2587, 16
    %v2602 = vpop.permute.xlu0 %2601
    %2607 = vrot.lane.b32.xlu0 %v2520, 24
    %v2608 = vpop.permute.xlu0 %2607
    %2609 = vrot.lane.b32.xlu0 %v2588, 24
    %v2610 = vpop.permute.xlu0 %2609
    %v2613 = vsel %vm1028, %v2517, %v2592
    %v2614 = vsel %vm1028, %v2585, %v2594
    %vm2615 = vcmask 130048
    %v2616 = vsel %vm2615, %v2613, %v2600
    %v2617 = vsel %vm2615, %v2614, %v2602
    %vm2618 = vcmask 195584
    %v2619 = vsel %vm2618, %v2616, %v2608
    %v2620 = vsel %vm2618, %v2617, %v2610
    %v2621 = vld [vmem:[%s3] sm:$0xff]
    %v2622 = vld [vmem:[%s3 + $0x8] sm:$0xff]
    %v2623 = vld [vmem:[%s3 + $0x10] sm:$0xff]
    %v2624 = vld [vmem:[%s3 + $0x18] sm:$0xff]
    %v2625 = vld [vmem:[%s4] sm:$0x1]
    %v2627 = vlaneseq
    %v2628 = vshrl.u32 %v2627, 7
    %v2629 = vsub.s32 0, %v2628
    %v2630 = vrot.slane %v2625, %v2629
    %vm2632 = vcmask 261120
    %v2634 = vsel %vm2632, %v2619, 0
    %v2637 = vsel %vm2632, %v2620, 0
    %2639 = vmatprep.subr.mxu0 0.0
    %2640 = vmatpush1.msra.mxu0 %v2621
    %2641 = vmatprep.subr.mxu0 0.0
    %2642 = vmatpush1.msra.mxu0 %v2622
    %2643 = vmatprep.subr.mxu0 0.0
    %2644 = vmatpush1.msra.mxu0 %v2623
    %2645 = vmatprep.subr.mxu0 0.0
    %2646 = vmatpush1.msra.mxu0 %v2624
    %2647 = vmatprep.subr.mxu0 0.0
    %2648 = vmatpush1.msra.mxu0 0.0
    %2649 = vmatprep.subr.mxu0 0.0
    %2650 = vmatpush1.msra.mxu0 0.0
    %2651 = vmatprep.subr.mxu0 0.0
    %2652 = vmatpush1.msra.mxu0 0.0
    %2653 = vmatprep.subr.mxu0 0.0
    %2654 = vmatpush1.msra.mxu0 0.0
    %2655 = vmatprep.subr.mxu0 0.0
    %2656 = vmatpush1.msra.mxu0 0.0
    %2657 = vmatprep.subr.mxu0 0.0
    %2658 = vmatpush1.msra.mxu0 0.0
    %2659 = vmatprep.subr.mxu0 0.0
    %2660 = vmatpush1.msra.mxu0 0.0
    %2661 = vmatprep.subr.mxu0 0.0
    %2662 = vmatpush1.msra.mxu0 0.0
    %2663 = vmatprep.subr.mxu0 0.0
    %2664 = vmatpush1.msra.mxu0 0.0
    %2665 = vmatprep.subr.mxu0 0.0
    %2666 = vmatpush1.msra.mxu0 0.0
    %2667 = vmatprep.subr.mxu0 0.0
    %2668 = vmatpush1.msra.mxu0 0.0
    %2669 = vmatprep.subr.mxu0 0.0
    %2670 = vmatpush1.msra.mxu0 0.0
    %2671 = vmatprep.subr.mxu0 0.0
    %2672 = vmatpush1.msra.mxu0 0.0
    %2673 = vmatprep.subr.mxu0 0.0
    %2674 = vmatpush1.msra.mxu0 0.0
    %2675 = vmatprep.subr.mxu0 0.0
    %2676 = vmatpush1.msra.mxu0 0.0
    %2677 = vmatprep.subr.mxu0 0.0
    %2678 = vmatpush1.msra.mxu0 0.0
    %2679 = vmatprep.subr.mxu0 0.0
    %2680 = vmatpush1.msra.mxu0 0.0
    %2681 = vmatprep.subr.mxu0 0.0
    %2682 = vmatpush1.msra.mxu0 0.0
    %2683 = vmatprep.subr.mxu0 0.0
    %2684 = vmatpush1.msra.mxu0 0.0
    %2685 = vmatprep.subr.mxu0 0.0
    %2686 = vmatpush1.msra.mxu0 0.0
    %2687 = vmatprep.subr.mxu0 0.0
    %2688 = vmatpush1.msra.mxu0 0.0
    %2689 = vmatprep.subr.mxu0 0.0
    %2690 = vmatpush1.msra.mxu0 0.0
    %2691 = vmatprep.subr.mxu0 0.0
    %2692 = vmatpush1.msra.mxu0 0.0
    %2693 = vmatprep.subr.mxu0 0.0
    %2694 = vmatpush1.msra.mxu0 0.0
    %2695 = vmatprep.subr.mxu0 0.0
    %2696 = vmatpush1.msra.mxu0 0.0
    %2697 = vmatprep.subr.mxu0 0.0
    %2698 = vmatpush1.msra.mxu0 0.0
    %2699 = vmatprep.subr.mxu0 0.0
    %2700 = vmatpush1.msra.mxu0 0.0
    %2701 = vmatprep.subr.mxu0 0.0
    %2702 = vmatpush1.msra.mxu0 0.0
    %2703 = vmatprep.mubr.f32.mxu0 0.0
    %2704 = vmatmul.mubr.f32.gmra.mrb[0].mxu0 %v2634
    %v2705 = vpop.f32.mrb[0].mxu0
    %v2706 = vadd.f32 %v2630, %v2705
    %v2707 = vpop.f32.mrb[0].mxu0
    %2708 = vmatprep.mubr.f32.mxu0 0.0
    %2709 = vmatmul.mubr.f32.gmra.mrb[0].mxu0 %v2637
    %v2710 = vpop.f32.mrb[0].mxu0
    %v2711 = vadd.f32 %v2630, %v2710
    %v2712 = vpop.f32.mrb[0].mxu0
    %2713 = vdwg.mxu0
    %v2714 = vadd.f32 %v2706, %v41
    %v2715 = vadd.f32 %v2711, %v42
    %v2716 = vsel %vm2632, %v2714, 0.0
    %2717 = vadd.xlane.f32.xlu0 %v2716
    %v2718 = vpop.xlane.xlu0 %2717
    %v2719 = vsel %vm2632, %v2715, 0.0
    %2720 = vadd.xlane.f32.xlu0 %v2719
    %v2721 = vpop.xlane.xlu0 %2720
    %v2722 = vrcp.pop 32.0
    %v2723 = vmul.f32 %v2718, %v2722
    %v2724 = vmul.f32 %v2721, %v2722
    %v2725 = vsub.f32 %v2714, %v2723
    %v2726 = vsub.f32 %v2715, %v2724
    %v2727 = vmul.f32 %v2725, %v2725
    %v2728 = vmul.f32 %v2726, %v2726
    %v2729 = vsel %vm2632, %v2727, 0.0
    %2730 = vadd.xlane.f32.xlu0 %v2729
    %v2731 = vpop.xlane.xlu0 %2730
    %v2732 = vsel %vm2632, %v2728, 0.0
    %2733 = vadd.xlane.f32.xlu0 %v2732
    %v2734 = vpop.xlane.xlu0 %2733
    %v2735 = vmul.f32 %v2731, %v2722
    %v2736 = vmul.f32 %v2734, %v2722
    %v2737 = vadd.f32 %v2735, 1e-05
    %v2738 = vadd.f32 %v2736, 1e-05
    %v2739 = vrsqrt.pop %v2737
    %v2740 = vrsqrt.pop %v2738
    %v2741 = vmul.f32 %v2725, %v2739
    %v2742 = vmul.f32 %v2726, %v2740
    %v2743 = vld [vmem:[%s5] sm:$0x1]
    %v2745 = vlaneseq
    %v2746 = vshrl.u32 %v2745, 7
    %v2747 = vsub.s32 0, %v2746
    %v2748 = vrot.slane %v2743, %v2747
    %v2750 = vmul.f32 %v2741, %v2748
    %v2751 = vmul.f32 %v2742, %v2748
    %v2752 = vld [vmem:[%s6] sm:$0x1]
    %v2754 = vlaneseq
    %v2755 = vshrl.u32 %v2754, 7
    %v2756 = vsub.s32 0, %v2755
    %v2757 = vrot.slane %v2752, %v2756
    %v2759 = vadd.f32 %v2750, %v2757
    %v2760 = vadd.f32 %v2751, %v2757
    %2761 = vst.msk [vmem:[#allocation5] sm:$0xff] %vm2632, %v2759
    %2762 = vst.msk [vmem:[#allocation5 + $0x8] sm:$0xff] %vm2632, %v2760
    // Predicated region
    $region34: #{attention_forward.1} parent=1 // pred_check
      _
    $region35: #{attention_forward.1} parent=1 // pred_check_branch
      %2764 = sbr.rel (0) target = $region37
    $region36: #{attention_forward.1} parent=1 // pred_region
      %s2766 = ssub.s32 256, 256
      %2767 = vsyncadd [#allocation4], %s2766
      %s2768 = sshll.u32 [#allocation5], 4
      %s2769 = int_to_ptr.vmem [resolvable:$true] %s2768
      %2774 = dma.vmem_to_hbm [thread:$0]  %s2769, 256, %s7, [#allocation4], 128, 128, 8
    $region37: #{attention_forward.1} parent=1 // pred_fallthru
      _
    // Predicated region
    $region38: #{attention_forward.1} parent=1 // pred_check
      _
    $region39: #{attention_forward.1} parent=1 // pred_check_branch
      %2776 = sbr.rel (0) target = $region41
    $region40: #{attention_forward.1} parent=1 // pred_region
      %2777 = dma.done [#allocation4], 256
    $region41: #{attention_forward.1} parent=1 // pred_fallthru
      _
    %2778 = vsyncpa [#allocation3], 1
    %2779 = vsyncpa [#allocation4], 1

</llo_original>
